<compile_context>
chip_gen: v7x
topology: tpu7x:2x2x1
jax: 0.10.0
libtpu: 0.0.40
codegen_flags: <defaults>
</compile_context>

<pallas_src>
import jax
import jax.numpy as jnp
from jax.experimental import pallas as pl
from jax.experimental.pallas import tpu as pltpu

NUM_FLOWS = 3          # number of composited planar flows
_SUBLANE = 8
_LANE = 128
_MAX_TILE_ROWS = 256   # batch-tile cap; keeps double-buffered z in/out tiny


def _round_up(x, m):
    return (x + m - 1) // m * m


def _choose_batch_tile(B, D):
    """Batch tile: whole (8-padded) batch if small; otherwise a multiple of 128
    so the lane-dense (1, TB) logabsdet block stays tile-aligned."""
    if B <= _MAX_TILE_ROWS:
        return _round_up(B, _SUBLANE)
    tb = _MAX_TILE_ROWS
    # shrink for very wide feature dims (~4 live row-blocks must stay small)
    while tb > _LANE and 4 * tb * D * 4 > (8 << 20):
        tb //= 2
    return tb


def _composite_kernel(z_ref, w_ref, u_ref, b_ref, c_ref, zout_ref, ld_ref):
    """Cascade NUM_FLOWS planar flows over one batch tile.

    z_ref   : (TB, D)  VMEM  input batch tile
    w_ref   : (KP, D)  VMEM  planar w parameters (flow axis padded to KP)
    u_ref   : (KP, D)  VMEM  reparameterized planar u parameters
    b_ref   : (KP,)    SMEM  planar biases (scalar reads)
    c_ref   : (KP, KP) SMEM  C[j, k] = u_hat_j . w_k (scalar reads)
    zout_ref: (TB, D)  VMEM  transformed batch tile
    ld_ref  : (1, TB)  VMEM  accumulated log|det|, lane-dense (batch in lanes)
    """
    tb = z_ref.shape[0]
    kp = w_ref.shape[0]

    z0 = z_ref[...]                                        # (TB, D)

    # (1) One MXU matmul for the D-contraction, batch in the lane dim:
    #     lin0[k, b] = sum_d w[k, d] * z0[b, d]            -> (KP, TB)
    lin0 = jax.lax.dot_general(
        w_ref[...], z0,
        dimension_numbers=(((1,), (1,)), ((), ())),
        precision=jax.lax.Precision.HIGHEST,
        preferred_element_type=jnp.float32)

    # (2) Flow cascade: only K scalar*vector FMAs + tanh/log on lane-dense
    #     (1, TB) rows.  K is small and static -> fully unrolled.
    h_rows = []
    logdet = jnp.zeros((1, tb), dtype=jnp.float32)
    for k in range(NUM_FLOWS):
        lin = lin0[k:k + 1, :] + b_ref[k]                  # (1, TB)
        for j in range(k):
            lin = lin + c_ref[j, k] * h_rows[j]            # scalar * vector FMA
        h = jnp.tanh(lin)                                  # (1, TB) on EUP
        h_rows.append(h)
        one_m_h2 = 1.0 - h * h
        # keep abs(): dropping it for log1p would rely on 1 + uw*(1-h^2) > 0
        logdet = logdet + jnp.log(jnp.abs(1.0 + c_ref[k, k] * one_m_h2))

    # (3) z_out = z0 + H^T @ U_hat  (second MXU matmul); pad H to KP rows with
    #     zeros so the padded u rows contribute nothing.
    if kp > NUM_FLOWS:
        h_rows.append(jnp.zeros((kp - NUM_FLOWS, tb), jnp.float32))
    H = jnp.concatenate(h_rows, axis=0)                    # (KP, TB)
    delta = jnp.dot(H.T, u_ref[...],
                    precision=jax.lax.Precision.HIGHEST,
                    preferred_element_type=jnp.float32)    # (TB, D)

    zout_ref[...] = (z0 + delta).astype(zout_ref.dtype)
    ld_ref[...] = logdet                                   # lane-dense store


@jax.jit
def composite_forward(z, w, u_hat, b):
    """Composite of NUM_FLOWS planar flows. Returns (z_out (B, D), logabsdet (B,))."""
    B, D = z.shape
    K = w.shape[0]
    assert K == NUM_FLOWS
    KP = _round_up(K, _SUBLANE)                 # pad flow axis to a sublane tile

    # Sublane-pad flow parameters; padded rows are inert (their H rows are 0).
    w_p = jnp.zeros((KP, D), jnp.float32).at[:K].set(w)
    u_p = jnp.zeros((KP, D), jnp.float32).at[:K].set(u_hat)
    b_p = jnp.zeros((KP,), jnp.float32).at[:K].set(b)
    # C[j, k] = u_hat_j . w_k : strict upper triangle feeds the cascade
    # corrections, the diagonal is (u_hat_k . w_k) for the logabsdet.
    c = jnp.einsum("jd,kd->jk", u_p, w_p, precision="highest")   # (KP, KP)

    TB = _choose_batch_tile(B, D)
    B_pad = _round_up(B, TB)
    z_p = z if B_pad == B else jnp.pad(z, ((0, B_pad - B), (0, 0)))
    grid = B_pad // TB

    z_out, ld = pl.pallas_call(
        _composite_kernel,
        out_shape=(
            jax.ShapeDtypeStruct((B_pad, D), z.dtype),
            jax.ShapeDtypeStruct((1, B_pad), jnp.float32),
        ),
        grid_spec=pltpu.PrefetchScalarGridSpec(
            num_scalar_prefetch=0,
            grid=(grid,),
            in_specs=[
                pl.BlockSpec((TB, D), lambda i: (i, 0)),               # z tile
                pl.BlockSpec((KP, D), lambda i: (0, 0)),               # w (resident)
                pl.BlockSpec((KP, D), lambda i: (0, 0)),               # u_hat (resident)
                pl.BlockSpec(memory_space=pltpu.MemorySpace.SMEM),     # b  (scalars)
                pl.BlockSpec(memory_space=pltpu.MemorySpace.SMEM),     # C  (scalars)
            ],
            out_specs=[
                pl.BlockSpec((TB, D), lambda i: (i, 0)),               # z_out tile
                pl.BlockSpec((1, TB), lambda i: (0, i)),               # logdet, lane-dense
            ],
        ),
        compiler_params=pltpu.CompilerParams(
            dimension_semantics=("parallel",),          # megacore-shardable batch axis
            vmem_limit_bytes=32 * 1024 * 1024,          # safe on v5e/v6e/v7x
        ),
    )(z_p, w_p, u_p, b_p, c)

    return z_out[:B], ld[0, :B]


def make_params(key, num_flows, dim):
    """Deterministic planar-flow parameters (+ invertibility reparam of u)."""
    kw, ku, kb = jax.random.split(key, 3)
    w = 0.1 * jax.random.normal(kw, (num_flows, dim), dtype=jnp.float32)
    u = 0.1 * jax.random.normal(ku, (num_flows, dim), dtype=jnp.float32)
    b = 0.1 * jax.random.normal(kb, (num_flows,), dtype=jnp.float32)
    # u_hat reparameterization (plain JAX glue): ensures 1 + u_hat.w > 0
    inner = jnp.sum(w * u, axis=-1, keepdims=True)
    u_hat = u + (jax.nn.softplus(inner) - 1.0 - inner) * w / jnp.sum(
        w * w, axis=-1, keepdims=True)
    return w, u_hat, b


def reference_forward(z, w, u_hat, b):
    """Pure-JAX reference of the same cascade (elementwise, full f32)."""
    B = z.shape[0]
    logdet = jnp.zeros((B,), jnp.float32)
    for k in range(w.shape[0]):
        lin = jnp.sum(z * w[k][None, :], axis=-1) + b[k]
        h = jnp.tanh(lin)
        uw = jnp.sum(u_hat[k] * w[k])
        logdet = logdet + jnp.log(jnp.abs(1.0 + uw * (1.0 - h * h)))
        z = z + u_hat[k][None, :] * h[:, None]
    return z, logdet


if __name__ == "__main__":
    key = jax.random.PRNGKey(0)
    k_z1, k_z2, k_p = jax.random.split(key, 3)

    D = 32
    w, u_hat, b = make_params(k_p, NUM_FLOWS, D)

    # Two cases: single-tile grid=(1,) and tiled grid=(2,) (pipelined, megacore).
    for k_z, B in ((k_z1, 128), (k_z2, 512)):
        z = jax.random.normal(k_z, (B, D), dtype=jnp.float32)
        z_out, logabsdet = composite_forward(z, w, u_hat, b)
        jax.block_until_ready((z_out, logabsdet))

        z_ref, ld_ref = reference_forward(z, w, u_hat, b)
        assert z_out.shape == (B, D) and logabsdet.shape == (B,)
        # small cushion for MXU summation-order differences vs elementwise ref
        assert jnp.allclose(z_out, z_ref, atol=1e-4, rtol=1e-4)
        assert jnp.allclose(logabsdet, ld_ref, atol=1e-4, rtol=1e-4)

    print("KERNEL_OK")
</pallas_src>

<mosaic_0001>
module attributes {stable_mosaic.version = 11 : i64} {
  func.func @_composite_kernel(%arg0: i32, %arg1: memref<128x32xf32, #tpu.memory_space<vmem>>, %arg2: memref<8x32xf32, #tpu.memory_space<vmem>>, %arg3: memref<8x32xf32, #tpu.memory_space<vmem>>, %arg4: memref<8xf32, #tpu.memory_space<smem>>, %arg5: memref<8x8xf32, #tpu.memory_space<smem>>, %arg6: memref<128x32xf32, #tpu.memory_space<vmem>>, %arg7: memref<1x128xf32, #tpu.memory_space<vmem>>) attributes {dimension_semantics = [#tpu.dimension_semantics<parallel>], iteration_bounds = array<i64: 1>, scalar_prefetch = 0 : i64, scratch_operands = 0 : i64, tpu.core_type = #tpu.core_type<tc>, window_params = [{transform_indices = @transform_0, window_bounds = array<i64: 128, 32>}, {pipeline_mode = #tpu.pipeline_mode<synchronous>, transform_indices = @transform_1, window_bounds = array<i64: 8, 32>}, {pipeline_mode = #tpu.pipeline_mode<synchronous>, transform_indices = @transform_2, window_bounds = array<i64: 8, 32>}, {transform_indices = @transform_3, window_bounds = array<i64: 8>}, {transform_indices = @transform_4, window_bounds = array<i64: 8, 8>}, {transform_indices = @transform_5, window_bounds = array<i64: 128, 32>}, {transform_indices = @transform_6, window_bounds = array<i64: 1, 128>}]} {
    %c0 = arith.constant 0 : index
    %c0_0 = arith.constant 0 : index
    %0 = vector.load %arg1[%c0, %c0_0] : memref<128x32xf32, #tpu.memory_space<vmem>>, vector<128x32xf32>
    %c0_1 = arith.constant 0 : index
    %c0_2 = arith.constant 0 : index
    %1 = vector.load %arg2[%c0_1, %c0_2] : memref<8x32xf32, #tpu.memory_space<vmem>>, vector<8x32xf32>
    %cst = arith.constant dense<0.000000e+00> : vector<8x128xf32>
    %2 = tpu.matmul %1, %0, %cst {dimension_numbers = #tpu.dot_dimension_numbers<[1], [1], [0], [0], [0, 0, 1, 0], [], []>, precision = #tpu.contract_precision<fp32>} : vector<8x32xf32>, vector<128x32xf32>, vector<8x128xf32> -> vector<8x128xf32>
    %cst_3 = arith.constant 0.000000e+00 : f32
    %3 = vector.broadcast %cst_3 : f32 to vector<1x128xf32>
    %4 = vector.extract_strided_slice %2 {offsets = [0, 0], sizes = [1, 128], strides = [1, 1]} : vector<8x128xf32> to vector<1x128xf32>
    %c0_4 = arith.constant 0 : index
    %5 = memref.load %arg4[%c0_4] : memref<8xf32, #tpu.memory_space<smem>>
    %6 = vector.broadcast %5 : f32 to vector<1x128xf32>
    %7 = arith.addf %4, %6 : vector<1x128xf32>
    %8 = math.tanh %7 : vector<1x128xf32>
    %9 = arith.mulf %8, %8 : vector<1x128xf32>
    %cst_5 = arith.constant 1.000000e+00 : f32
    %10 = vector.broadcast %cst_5 : f32 to vector<1x128xf32>
    %11 = arith.subf %10, %9 : vector<1x128xf32>
    %c0_6 = arith.constant 0 : index
    %c0_7 = arith.constant 0 : index
    %12 = memref.load %arg5[%c0_6, %c0_7] : memref<8x8xf32, #tpu.memory_space<smem>>
    %13 = vector.broadcast %12 : f32 to vector<1x128xf32>
    %14 = arith.mulf %13, %11 : vector<1x128xf32>
    %cst_8 = arith.constant 1.000000e+00 : f32
    %15 = vector.broadcast %cst_8 : f32 to vector<1x128xf32>
    %16 = arith.addf %15, %14 : vector<1x128xf32>
    %17 = math.absf %16 : vector<1x128xf32>
    %18 = math.log %17 : vector<1x128xf32>
    %19 = arith.addf %3, %18 : vector<1x128xf32>
    %20 = vector.extract_strided_slice %2 {offsets = [1, 0], sizes = [1, 128], strides = [1, 1]} : vector<8x128xf32> to vector<1x128xf32>
    %c1 = arith.constant 1 : index
    %21 = memref.load %arg4[%c1] : memref<8xf32, #tpu.memory_space<smem>>
    %22 = vector.broadcast %21 : f32 to vector<1x128xf32>
    %23 = arith.addf %20, %22 : vector<1x128xf32>
    %c0_9 = arith.constant 0 : index
    %c1_10 = arith.constant 1 : index
    %24 = memref.load %arg5[%c0_9, %c1_10] : memref<8x8xf32, #tpu.memory_space<smem>>
    %25 = vector.broadcast %24 : f32 to vector<1x128xf32>
    %26 = arith.mulf %25, %8 : vector<1x128xf32>
    %27 = arith.addf %23, %26 : vector<1x128xf32>
    %28 = math.tanh %27 : vector<1x128xf32>
    %29 = arith.mulf %28, %28 : vector<1x128xf32>
    %cst_11 = arith.constant 1.000000e+00 : f32
    %30 = vector.broadcast %cst_11 : f32 to vector<1x128xf32>
    %31 = arith.subf %30, %29 : vector<1x128xf32>
    %c1_12 = arith.constant 1 : index
    %c1_13 = arith.constant 1 : index
    %32 = memref.load %arg5[%c1_12, %c1_13] : memref<8x8xf32, #tpu.memory_space<smem>>
    %33 = vector.broadcast %32 : f32 to vector<1x128xf32>
    %34 = arith.mulf %33, %31 : vector<1x128xf32>
    %cst_14 = arith.constant 1.000000e+00 : f32
    %35 = vector.broadcast %cst_14 : f32 to vector<1x128xf32>
    %36 = arith.addf %35, %34 : vector<1x128xf32>
    %37 = math.absf %36 : vector<1x128xf32>
    %38 = math.log %37 : vector<1x128xf32>
    %39 = arith.addf %19, %38 : vector<1x128xf32>
    %40 = vector.extract_strided_slice %2 {offsets = [2, 0], sizes = [1, 128], strides = [1, 1]} : vector<8x128xf32> to vector<1x128xf32>
    %c2 = arith.constant 2 : index
    %41 = memref.load %arg4[%c2] : memref<8xf32, #tpu.memory_space<smem>>
    %42 = vector.broadcast %41 : f32 to vector<1x128xf32>
    %43 = arith.addf %40, %42 : vector<1x128xf32>
    %c0_15 = arith.constant 0 : index
    %c2_16 = arith.constant 2 : index
    %44 = memref.load %arg5[%c0_15, %c2_16] : memref<8x8xf32, #tpu.memory_space<smem>>
    %45 = vector.broadcast %44 : f32 to vector<1x128xf32>
    %46 = arith.mulf %45, %8 : vector<1x128xf32>
    %47 = arith.addf %43, %46 : vector<1x128xf32>
    %c1_17 = arith.constant 1 : index
    %c2_18 = arith.constant 2 : index
    %48 = memref.load %arg5[%c1_17, %c2_18] : memref<8x8xf32, #tpu.memory_space<smem>>
    %49 = vector.broadcast %48 : f32 to vector<1x128xf32>
    %50 = arith.mulf %49, %28 : vector<1x128xf32>
    %51 = arith.addf %47, %50 : vector<1x128xf32>
    %52 = math.tanh %51 : vector<1x128xf32>
    %53 = arith.mulf %52, %52 : vector<1x128xf32>
    %cst_19 = arith.constant 1.000000e+00 : f32
    %54 = vector.broadcast %cst_19 : f32 to vector<1x128xf32>
    %55 = arith.subf %54, %53 : vector<1x128xf32>
    %c2_20 = arith.constant 2 : index
    %c2_21 = arith.constant 2 : index
    %56 = memref.load %arg5[%c2_20, %c2_21] : memref<8x8xf32, #tpu.memory_space<smem>>
    %57 = vector.broadcast %56 : f32 to vector<1x128xf32>
    %58 = arith.mulf %57, %55 : vector<1x128xf32>
    %cst_22 = arith.constant 1.000000e+00 : f32
    %59 = vector.broadcast %cst_22 : f32 to vector<1x128xf32>
    %60 = arith.addf %59, %58 : vector<1x128xf32>
    %61 = math.absf %60 : vector<1x128xf32>
    %62 = math.log %61 : vector<1x128xf32>
    %63 = arith.addf %39, %62 : vector<1x128xf32>
    %cst_23 = arith.constant 0.000000e+00 : f32
    %64 = vector.broadcast %cst_23 : f32 to vector<5x128xf32>
    %65 = tpu.concatenate %8, %28, %52, %64 in 0 : vector<1x128xf32>, vector<1x128xf32>, vector<1x128xf32>, vector<5x128xf32> -> vector<8x128xf32>
    %66 = tpu.transpose %65, [1, 0] : vector<8x128xf32> -> vector<128x8xf32>
    %c0_24 = arith.constant 0 : index
    %c0_25 = arith.constant 0 : index
    %67 = vector.load %arg3[%c0_24, %c0_25] : memref<8x32xf32, #tpu.memory_space<vmem>>, vector<8x32xf32>
    %cst_26 = arith.constant dense<0.000000e+00> : vector<128x32xf32>
    %68 = tpu.matmul %66, %67, %cst_26 {dimension_numbers = #tpu.dot_dimension_numbers<[1], [0], [0], [1], [0, 0, 1, 1], [], []>, precision = #tpu.contract_precision<fp32>} : vector<128x8xf32>, vector<8x32xf32>, vector<128x32xf32> -> vector<128x32xf32>
    %69 = arith.addf %0, %68 : vector<128x32xf32>
    %c0_27 = arith.constant 0 : index
    %c0_28 = arith.constant 0 : index
    %70 = vector.load %arg6[%c0_27, %c0_28] : memref<128x32xf32, #tpu.memory_space<vmem>>, vector<128x32xf32>
    tpu.vector_store %arg6[%c0_27, %c0_28], %69 {strides = array<i32>} : memref<128x32xf32, #tpu.memory_space<vmem>>, vector<128x32xf32>,
    %c0_29 = arith.constant 0 : index
    %c0_30 = arith.constant 0 : index
    %71 = vector.load %arg7[%c0_29, %c0_30] : memref<1x128xf32, #tpu.memory_space<vmem>>, vector<1x128xf32>
    tpu.vector_store %arg7[%c0_29, %c0_30], %63 {strides = array<i32>} : memref<1x128xf32, #tpu.memory_space<vmem>>, vector<1x128xf32>,
    return
  }
  func.func @transform_0(%arg0: i32) -> (i32, i32) {
    %c0_i32 = arith.constant 0 : i32
    %c0_i32_0 = arith.constant 0 : i32
    return %arg0, %c0_i32 : i32, i32
  }
  func.func @transform_1(%arg0: i32) -> (i32, i32) {
    %c0_i32 = arith.constant 0 : i32
    %c0_i32_0 = arith.constant 0 : i32
    %c0_i32_1 = arith.constant 0 : i32
    return %c0_i32, %c0_i32_0 : i32, i32
  }
  func.func @transform_2(%arg0: i32) -> (i32, i32) {
    %c0_i32 = arith.constant 0 : i32
    %c0_i32_0 = arith.constant 0 : i32
    %c0_i32_1 = arith.constant 0 : i32
    return %c0_i32, %c0_i32_0 : i32, i32
  }
  func.func @transform_3(%arg0: i32) -> i32 {
    %c0_i32 = arith.constant 0 : i32
    %c0_i32_0 = arith.constant 0 : i32
    return %c0_i32 : i32
  }
  func.func @transform_4(%arg0: i32) -> (i32, i32) {
    %c0_i32 = arith.constant 0 : i32
    %c0_i32_0 = arith.constant 0 : i32
    %c0_i32_1 = arith.constant 0 : i32
    return %c0_i32, %c0_i32_0 : i32, i32
  }
  func.func @transform_5(%arg0: i32) -> (i32, i32) {
    %c0_i32 = arith.constant 0 : i32
    %c0_i32_0 = arith.constant 0 : i32
    return %arg0, %c0_i32 : i32, i32
  }
  func.func @transform_6(%arg0: i32) -> (i32, i32) {
    %c0_i32 = arith.constant 0 : i32
    %c0_i32_0 = arith.constant 0 : i32
    return %c0_i32, %arg0 : i32, i32
  }
}

</mosaic_0001>

<llo_original>
// kernel: composite_forward.1
$region0: #{composite_forward.1}
  #allocation0 [shape = 'u32[]', space=smem, size = 0x4, offset = 0x4, fixed_abs, tag = 'smem constant byte address 0x4 - core index']
  #allocation1 [shape = 'u32[144,128]{1,0:T(1,128)}', space=vmem, size = 0x12000, scoped, tag = 'internal scratch']
  %s0 = inlined_call_operand.vmem [shape: f32[128,32], index: 0, kind: input, shape index: {}]
  %s1 = inlined_call_operand.vmem [shape: f32[8,32], index: 1, kind: input, shape index: {}]
  %s2 = inlined_call_operand.vmem [shape: f32[8,32], index: 2, kind: input, shape index: {}]
  %s3 = inlined_call_operand.vmem [shape: f32[8], index: 3, kind: input, shape index: {}]
  %s4 = inlined_call_operand.vmem [shape: f32[8,8], index: 4, kind: input, shape index: {}]
  %s5 = inlined_call_operand.vmem [shape: f32[128,32], index: 5, kind: output, shape index: {0}]
  %s6 = inlined_call_operand.hbm [shape: f32[1,128], index: 6, kind: output, shape index: {1}]
  %7 = xla_tuple %s5, %s6
  %s8 = sld [smem:[#allocation0]]
  $region46: #{composite_forward.1} parent=0
    _
  %s10 = ssub.s32 1, %s8
  %s11 = scalar_select 0, %s10, %s8
  $region1: #{composite_forward.1} parent=0
    #allocation2 [shape = 'u8[512]{0}', space=smem, size = 0x200, scoped, tag = 'input window, operand 3, single buffered']
    #allocation3 [shape = 's32[1]{0}', space=sflag, size = 0x4, scoped, tag = 'scoped memory for composite_forward.1']
    #allocation4 [shape = 's32[1]{0}', space=sflag, size = 0x4, scoped, tag = 'scoped memory for composite_forward.1']
    #allocation5 [shape = 'u8[4096]{0}', space=smem, size = 0x1000, scoped, tag = 'input window, operand 4, single buffered']
    #allocation6 [shape = 's32[1]{0}', space=sflag, size = 0x4, scoped, tag = 'scoped memory for composite_forward.1']
    #allocation7 [shape = 'u8[512]{0}', space=vmem, size = 0x400, scoped, tag = 'output window, operand 1, single buffered']
    %12 = vsyncpa [#allocation4], 0
    %13 = vsyncpa [#allocation6], 0
    %14 = vsyncpa [#allocation3], 0
    // Predicated region
    $region2: #{composite_forward.1} parent=1 // pred_check
      _
    $region3: #{composite_forward.1} parent=1 // pred_check_branch
      %16 = sbr.rel (0) target = $region5
    $region4: #{composite_forward.1} parent=1 // pred_region
      _
    $region5: #{composite_forward.1} parent=1 // pred_fallthru
      _
    // Predicated region
    $region6: #{composite_forward.1} parent=1 // pred_check
      _
    $region7: #{composite_forward.1} parent=1 // pred_check_branch
      %18 = sbr.rel (0) target = $region9
    $region8: #{composite_forward.1} parent=1 // pred_region
      _
    $region9: #{composite_forward.1} parent=1 // pred_fallthru
      _
    // Predicated region
    $region10: #{composite_forward.1} parent=1 // pred_check
      _
    $region11: #{composite_forward.1} parent=1 // pred_check_branch
      %20 = sbr.rel (0) target = $region13
    $region12: #{composite_forward.1} parent=1 // pred_region
      _
    $region13: #{composite_forward.1} parent=1 // pred_fallthru
      _
    // Predicated region
    $region14: #{composite_forward.1} parent=1 // pred_check
      _
    $region15: #{composite_forward.1} parent=1 // pred_check_branch
      %22 = sbr.rel (0) target = $region17
    $region16: #{composite_forward.1} parent=1 // pred_region
      %s24 = ssub.s32 16, 16
      %25 = vsyncadd [#allocation4], %s24
      %s27 = sshll.u32 %s3, 4
      %s28 = int_to_ptr.vmem [resolvable:$true] %s27
      %30 = dma.vmem_to_smem %s28, 16, [#allocation2], [#allocation4]
    $region17: #{composite_forward.1} parent=1 // pred_fallthru
      _
    // Predicated region
    $region18: #{composite_forward.1} parent=1 // pred_check
      _
    $region19: #{composite_forward.1} parent=1 // pred_check_branch
      %32 = sbr.rel (0) target = $region21
    $region20: #{composite_forward.1} parent=1 // pred_region
      %s34 = ssub.s32 128, 128
      %35 = vsyncadd [#allocation6], %s34
      %s37 = sshll.u32 %s4, 4
      %s38 = int_to_ptr.vmem [resolvable:$true] %s37
      %40 = dma.vmem_to_smem %s38, 128, [#allocation5], [#allocation6]
    $region21: #{composite_forward.1} parent=1 // pred_fallthru
      _
    // Predicated region
    $region22: #{composite_forward.1} parent=1 // pred_check
      _
    $region23: #{composite_forward.1} parent=1 // pred_check_branch
      %42 = sbr.rel (0) target = $region25
    $region24: #{composite_forward.1} parent=1 // pred_region
      %43 = dma.done [#allocation4], 16
    $region25: #{composite_forward.1} parent=1 // pred_fallthru
      _
    // Predicated region
    $region26: #{composite_forward.1} parent=1 // pred_check
      _
    $region27: #{composite_forward.1} parent=1 // pred_check_branch
      %45 = sbr.rel (0) target = $region29
    $region28: #{composite_forward.1} parent=1 // pred_region
      %46 = dma.done [#allocation6], 128
    $region29: #{composite_forward.1} parent=1 // pred_fallthru
      _
    %47 = sfence
    %v48 = vld [vmem:[%s0] sm:$0xff]
    %v49 = vld [vmem:[%s0 + $0x8] sm:$0xff]
    %v50 = vld [vmem:[%s0 + $0x10] sm:$0xff]
    %v51 = vld [vmem:[%s0 + $0x18] sm:$0xff]
    %v52 = vld [vmem:[%s0 + $0x20] sm:$0xff]
    %v53 = vld [vmem:[%s0 + $0x28] sm:$0xff]
    %v54 = vld [vmem:[%s0 + $0x30] sm:$0xff]
    %v55 = vld [vmem:[%s0 + $0x38] sm:$0xff]
    %v56 = vld [vmem:[%s0 + $0x40] sm:$0xff]
    %v57 = vld [vmem:[%s0 + $0x48] sm:$0xff]
    %v58 = vld [vmem:[%s0 + $0x50] sm:$0xff]
    %v59 = vld [vmem:[%s0 + $0x58] sm:$0xff]
    %v60 = vld [vmem:[%s0 + $0x60] sm:$0xff]
    %v61 = vld [vmem:[%s0 + $0x68] sm:$0xff]
    %v62 = vld [vmem:[%s0 + $0x70] sm:$0xff]
    %v63 = vld [vmem:[%s0 + $0x78] sm:$0xff]
    %v64 = vld [vmem:[%s1] sm:$0xff]
    %vm65 = vcmask 261120
    %v67 = vsel %vm65, %v64, 0
    %v70 = vsel %vm65, %v48, 0
    %v73 = vsel %vm65, %v49, 0
    %v76 = vsel %vm65, %v50, 0
    %v79 = vsel %vm65, %v51, 0
    %v82 = vsel %vm65, %v52, 0
    %v85 = vsel %vm65, %v53, 0
    %v88 = vsel %vm65, %v54, 0
    %v91 = vsel %vm65, %v55, 0
    %v94 = vsel %vm65, %v56, 0
    %v97 = vsel %vm65, %v57, 0
    %v100 = vsel %vm65, %v58, 0
    %v103 = vsel %vm65, %v59, 0
    %v106 = vsel %vm65, %v60, 0
    %v109 = vsel %vm65, %v61, 0
    %v112 = vsel %vm65, %v62, 0
    %v115 = vsel %vm65, %v63, 0
    %117 = vmatprep.subr.mxu0 0.0
    %v118 = vand.u32 %v70, 4294901760
    %119 = vmatpush1.xpose.msra.mxu0 %v118
    %120 = vmatprep.subr.mxu0 0.0
    %v121 = vand.u32 %v73, 4294901760
    %122 = vmatpush1.xpose.msra.mxu0 %v121
    %123 = vmatprep.subr.mxu0 0.0
    %v124 = vand.u32 %v76, 4294901760
    %125 = vmatpush1.xpose.msra.mxu0 %v124
    %126 = vmatprep.subr.mxu0 0.0
    %v127 = vand.u32 %v79, 4294901760
    %128 = vmatpush1.xpose.msra.mxu0 %v127
    %129 = vmatprep.subr.mxu0 0.0
    %v130 = vand.u32 %v82, 4294901760
    %131 = vmatpush1.xpose.msra.mxu0 %v130
    %132 = vmatprep.subr.mxu0 0.0
    %v133 = vand.u32 %v85, 4294901760
    %134 = vmatpush1.xpose.msra.mxu0 %v133
    %135 = vmatprep.subr.mxu0 0.0
    %v136 = vand.u32 %v88, 4294901760
    %137 = vmatpush1.xpose.msra.mxu0 %v136
    %138 = vmatprep.subr.mxu0 0.0
    %v139 = vand.u32 %v91, 4294901760
    %140 = vmatpush1.xpose.msra.mxu0 %v139
    %141 = vmatprep.subr.mxu0 0.0
    %v142 = vand.u32 %v94, 4294901760
    %143 = vmatpush1.xpose.msra.mxu0 %v142
    %144 = vmatprep.subr.mxu0 0.0
    %v145 = vand.u32 %v97, 4294901760
    %146 = vmatpush1.xpose.msra.mxu0 %v145
    %147 = vmatprep.subr.mxu0 0.0
    %v148 = vand.u32 %v100, 4294901760
    %149 = vmatpush1.xpose.msra.mxu0 %v148
    %150 = vmatprep.subr.mxu0 0.0
    %v151 = vand.u32 %v103, 4294901760
    %152 = vmatpush1.xpose.msra.mxu0 %v151
    %153 = vmatprep.subr.mxu0 0.0
    %v154 = vand.u32 %v106, 4294901760
    %155 = vmatpush1.xpose.msra.mxu0 %v154
    %156 = vmatprep.subr.mxu0 0.0
    %v157 = vand.u32 %v109, 4294901760
    %158 = vmatpush1.xpose.msra.mxu0 %v157
    %159 = vmatprep.subr.mxu0 0.0
    %v160 = vand.u32 %v112, 4294901760
    %161 = vmatpush1.xpose.msra.mxu0 %v160
    %162 = vmatprep.subr.mxu0 0.0
    %v163 = vand.u32 %v115, 4294901760
    %164 = vmatpush1.xpose.msra.mxu0 %v163
    %165 = vmatprep.subr.mxu0 0.0
    %166 = vmatpush1.xpose.msra.mxu0 0.0
    %167 = vmatprep.subr.mxu0 0.0
    %168 = vmatpush1.xpose.msra.mxu0 0.0
    %169 = vmatprep.subr.mxu0 0.0
    %170 = vmatpush1.xpose.msra.mxu0 0.0
    %171 = vmatprep.subr.mxu0 0.0
    %172 = vmatpush1.xpose.msra.mxu0 0.0
    %173 = vmatprep.subr.mxu0 0.0
    %174 = vmatpush1.xpose.msra.mxu0 0.0
    %175 = vmatprep.subr.mxu0 0.0
    %176 = vmatpush1.xpose.msra.mxu0 0.0
    %177 = vmatprep.subr.mxu0 0.0
    %178 = vmatpush1.xpose.msra.mxu0 0.0
    %179 = vmatprep.subr.mxu0 0.0
    %180 = vmatpush1.xpose.msra.mxu0 0.0
    %181 = vmatprep.subr.mxu0 0.0
    %182 = vmatpush1.xpose.msra.mxu0 0.0
    %183 = vmatprep.subr.mxu0 0.0
    %184 = vmatpush1.xpose.msra.mxu0 0.0
    %185 = vmatprep.subr.mxu0 0.0
    %186 = vmatpush1.xpose.msra.mxu0 0.0
    %187 = vmatprep.subr.mxu0 0.0
    %188 = vmatpush1.xpose.msra.mxu0 0.0
    %189 = vmatprep.subr.mxu0 0.0
    %190 = vmatpush1.xpose.msra.mxu0 0.0
    %191 = vmatprep.subr.mxu0 0.0
    %192 = vmatpush1.xpose.msra.mxu0 0.0
    %193 = vmatprep.subr.mxu0 0.0
    %194 = vmatpush1.xpose.msra.mxu0 0.0
    %195 = vmatprep.subr.mxu0 0.0
    %196 = vmatpush1.xpose.msra.mxu0 0.0
    %197 = vmatprep.mubr.f32.mxu0 0.0
    %v198 = vand.u32 %v67, 4294901760
    %v199 = vsub.f32 %v67, %v198
    %v200 = vand.u32 %v199, 4294901760
    %v201 = vsub.f32 %v199, %v200
    %v202 = vand.u32 %v201, 4294901760
    %203 = vmatmul.mubr.f32.gmra.mrb[0].mxu0 %v202
    %v204 = vpop.f32.mrb[0].mxu0
    %v205 = vadd.f32 0.0, %v204
    %v206 = vpop.f32.mrb[0].mxu0
    %207 = vdwg.mxu0
    %208 = vmatprep.subr.mxu0 0.0
    %v209 = vand.u32 %v70, 4294901760
    %v210 = vsub.f32 %v70, %v209
    %v211 = vand.u32 %v210, 4294901760
    %v212 = vsub.f32 %v210, %v211
    %v213 = vand.u32 %v212, 4294901760
    %214 = vmatpush1.xpose.msra.mxu0 %v213
    %215 = vmatprep.subr.mxu0 0.0
    %v216 = vand.u32 %v73, 4294901760
    %v217 = vsub.f32 %v73, %v216
    %v218 = vand.u32 %v217, 4294901760
    %v219 = vsub.f32 %v217, %v218
    %v220 = vand.u32 %v219, 4294901760
    %221 = vmatpush1.xpose.msra.mxu0 %v220
    %222 = vmatprep.subr.mxu0 0.0
    %v223 = vand.u32 %v76, 4294901760
    %v224 = vsub.f32 %v76, %v223
    %v225 = vand.u32 %v224, 4294901760
    %v226 = vsub.f32 %v224, %v225
    %v227 = vand.u32 %v226, 4294901760
    %228 = vmatpush1.xpose.msra.mxu0 %v227
    %229 = vmatprep.subr.mxu0 0.0
    %v230 = vand.u32 %v79, 4294901760
    %v231 = vsub.f32 %v79, %v230
    %v232 = vand.u32 %v231, 4294901760
    %v233 = vsub.f32 %v231, %v232
    %v234 = vand.u32 %v233, 4294901760
    %235 = vmatpush1.xpose.msra.mxu0 %v234
    %236 = vmatprep.subr.mxu0 0.0
    %v237 = vand.u32 %v82, 4294901760
    %v238 = vsub.f32 %v82, %v237
    %v239 = vand.u32 %v238, 4294901760
    %v240 = vsub.f32 %v238, %v239
    %v241 = vand.u32 %v240, 4294901760
    %242 = vmatpush1.xpose.msra.mxu0 %v241
    %243 = vmatprep.subr.mxu0 0.0
    %v244 = vand.u32 %v85, 4294901760
    %v245 = vsub.f32 %v85, %v244
    %v246 = vand.u32 %v245, 4294901760
    %v247 = vsub.f32 %v245, %v246
    %v248 = vand.u32 %v247, 4294901760
    %249 = vmatpush1.xpose.msra.mxu0 %v248
    %250 = vmatprep.subr.mxu0 0.0
    %v251 = vand.u32 %v88, 4294901760
    %v252 = vsub.f32 %v88, %v251
    %v253 = vand.u32 %v252, 4294901760
    %v254 = vsub.f32 %v252, %v253
    %v255 = vand.u32 %v254, 4294901760
    %256 = vmatpush1.xpose.msra.mxu0 %v255
    %257 = vmatprep.subr.mxu0 0.0
    %v258 = vand.u32 %v91, 4294901760
    %v259 = vsub.f32 %v91, %v258
    %v260 = vand.u32 %v259, 4294901760
    %v261 = vsub.f32 %v259, %v260
    %v262 = vand.u32 %v261, 4294901760
    %263 = vmatpush1.xpose.msra.mxu0 %v262
    %264 = vmatprep.subr.mxu0 0.0
    %v265 = vand.u32 %v94, 4294901760
    %v266 = vsub.f32 %v94, %v265
    %v267 = vand.u32 %v266, 4294901760
    %v268 = vsub.f32 %v266, %v267
    %v269 = vand.u32 %v268, 4294901760
    %270 = vmatpush1.xpose.msra.mxu0 %v269
    %271 = vmatprep.subr.mxu0 0.0
    %v272 = vand.u32 %v97, 4294901760
    %v273 = vsub.f32 %v97, %v272
    %v274 = vand.u32 %v273, 4294901760
    %v275 = vsub.f32 %v273, %v274
    %v276 = vand.u32 %v275, 4294901760
    %277 = vmatpush1.xpose.msra.mxu0 %v276
    %278 = vmatprep.subr.mxu0 0.0
    %v279 = vand.u32 %v100, 4294901760
    %v280 = vsub.f32 %v100, %v279
    %v281 = vand.u32 %v280, 4294901760
    %v282 = vsub.f32 %v280, %v281
    %v283 = vand.u32 %v282, 4294901760
    %284 = vmatpush1.xpose.msra.mxu0 %v283
    %285 = vmatprep.subr.mxu0 0.0
    %v286 = vand.u32 %v103, 4294901760
    %v287 = vsub.f32 %v103, %v286
    %v288 = vand.u32 %v287, 4294901760
    %v289 = vsub.f32 %v287, %v288
    %v290 = vand.u32 %v289, 4294901760
    %291 = vmatpush1.xpose.msra.mxu0 %v290
    %292 = vmatprep.subr.mxu0 0.0
    %v293 = vand.u32 %v106, 4294901760
    %v294 = vsub.f32 %v106, %v293
    %v295 = vand.u32 %v294, 4294901760
    %v296 = vsub.f32 %v294, %v295
    %v297 = vand.u32 %v296, 4294901760
    %298 = vmatpush1.xpose.msra.mxu0 %v297
    %299 = vmatprep.subr.mxu0 0.0
    %v300 = vand.u32 %v109, 4294901760
    %v301 = vsub.f32 %v109, %v300
    %v302 = vand.u32 %v301, 4294901760
    %v303 = vsub.f32 %v301, %v302
    %v304 = vand.u32 %v303, 4294901760
    %305 = vmatpush1.xpose.msra.mxu0 %v304
    %306 = vmatprep.subr.mxu0 0.0
    %v307 = vand.u32 %v112, 4294901760
    %v308 = vsub.f32 %v112, %v307
    %v309 = vand.u32 %v308, 4294901760
    %v310 = vsub.f32 %v308, %v309
    %v311 = vand.u32 %v310, 4294901760
    %312 = vmatpush1.xpose.msra.mxu0 %v311
    %313 = vmatprep.subr.mxu0 0.0
    %v314 = vand.u32 %v115, 4294901760
    %v315 = vsub.f32 %v115, %v314
    %v316 = vand.u32 %v315, 4294901760
    %v317 = vsub.f32 %v315, %v316
    %v318 = vand.u32 %v317, 4294901760
    %319 = vmatpush1.xpose.msra.mxu0 %v318
    %320 = vmatprep.subr.mxu0 0.0
    %321 = vmatpush1.xpose.msra.mxu0 0.0
    %322 = vmatprep.subr.mxu0 0.0
    %323 = vmatpush1.xpose.msra.mxu0 0.0
    %324 = vmatprep.subr.mxu0 0.0
    %325 = vmatpush1.xpose.msra.mxu0 0.0
    %326 = vmatprep.subr.mxu0 0.0
    %327 = vmatpush1.xpose.msra.mxu0 0.0
    %328 = vmatprep.subr.mxu0 0.0
    %329 = vmatpush1.xpose.msra.mxu0 0.0
    %330 = vmatprep.subr.mxu0 0.0
    %331 = vmatpush1.xpose.msra.mxu0 0.0
    %332 = vmatprep.subr.mxu0 0.0
    %333 = vmatpush1.xpose.msra.mxu0 0.0
    %334 = vmatprep.subr.mxu0 0.0
    %335 = vmatpush1.xpose.msra.mxu0 0.0
    %336 = vmatprep.subr.mxu0 0.0
    %337 = vmatpush1.xpose.msra.mxu0 0.0
    %338 = vmatprep.subr.mxu0 0.0
    %339 = vmatpush1.xpose.msra.mxu0 0.0
    %340 = vmatprep.subr.mxu0 0.0
    %341 = vmatpush1.xpose.msra.mxu0 0.0
    %342 = vmatprep.subr.mxu0 0.0
    %343 = vmatpush1.xpose.msra.mxu0 0.0
    %344 = vmatprep.subr.mxu0 0.0
    %345 = vmatpush1.xpose.msra.mxu0 0.0
    %346 = vmatprep.subr.mxu0 0.0
    %347 = vmatpush1.xpose.msra.mxu0 0.0
    %348 = vmatprep.subr.mxu0 0.0
    %349 = vmatpush1.xpose.msra.mxu0 0.0
    %350 = vmatprep.subr.mxu0 0.0
    %351 = vmatpush1.xpose.msra.mxu0 0.0
    %352 = vmatprep.mubr.f32.mxu0 0.0
    %v353 = vand.u32 %v67, 4294901760
    %354 = vmatmul.mubr.f32.gmra.mrb[0].mxu0 %v353
    %v355 = vpop.f32.mrb[0].mxu0
    %v356 = vadd.f32 %v205, %v355
    %v357 = vpop.f32.mrb[0].mxu0
    %358 = vdwg.mxu0
    %359 = vmatprep.subr.mxu0 0.0
    %v360 = vand.u32 %v70, 4294901760
    %v361 = vsub.f32 %v70, %v360
    %362 = vmatpush1.xpose.msra.mxu0 %v361
    %363 = vmatprep.subr.mxu0 0.0
    %v364 = vand.u32 %v73, 4294901760
    %v365 = vsub.f32 %v73, %v364
    %366 = vmatpush1.xpose.msra.mxu0 %v365
    %367 = vmatprep.subr.mxu0 0.0
    %v368 = vand.u32 %v76, 4294901760
    %v369 = vsub.f32 %v76, %v368
    %370 = vmatpush1.xpose.msra.mxu0 %v369
    %371 = vmatprep.subr.mxu0 0.0
    %v372 = vand.u32 %v79, 4294901760
    %v373 = vsub.f32 %v79, %v372
    %374 = vmatpush1.xpose.msra.mxu0 %v373
    %375 = vmatprep.subr.mxu0 0.0
    %v376 = vand.u32 %v82, 4294901760
    %v377 = vsub.f32 %v82, %v376
    %378 = vmatpush1.xpose.msra.mxu0 %v377
    %379 = vmatprep.subr.mxu0 0.0
    %v380 = vand.u32 %v85, 4294901760
    %v381 = vsub.f32 %v85, %v380
    %382 = vmatpush1.xpose.msra.mxu0 %v381
    %383 = vmatprep.subr.mxu0 0.0
    %v384 = vand.u32 %v88, 4294901760
    %v385 = vsub.f32 %v88, %v384
    %386 = vmatpush1.xpose.msra.mxu0 %v385
    %387 = vmatprep.subr.mxu0 0.0
    %v388 = vand.u32 %v91, 4294901760
    %v389 = vsub.f32 %v91, %v388
    %390 = vmatpush1.xpose.msra.mxu0 %v389
    %391 = vmatprep.subr.mxu0 0.0
    %v392 = vand.u32 %v94, 4294901760
    %v393 = vsub.f32 %v94, %v392
    %394 = vmatpush1.xpose.msra.mxu0 %v393
    %395 = vmatprep.subr.mxu0 0.0
    %v396 = vand.u32 %v97, 4294901760
    %v397 = vsub.f32 %v97, %v396
    %398 = vmatpush1.xpose.msra.mxu0 %v397
    %399 = vmatprep.subr.mxu0 0.0
    %v400 = vand.u32 %v100, 4294901760
    %v401 = vsub.f32 %v100, %v400
    %402 = vmatpush1.xpose.msra.mxu0 %v401
    %403 = vmatprep.subr.mxu0 0.0
    %v404 = vand.u32 %v103, 4294901760
    %v405 = vsub.f32 %v103, %v404
    %406 = vmatpush1.xpose.msra.mxu0 %v405
    %407 = vmatprep.subr.mxu0 0.0
    %v408 = vand.u32 %v106, 4294901760
    %v409 = vsub.f32 %v106, %v408
    %410 = vmatpush1.xpose.msra.mxu0 %v409
    %411 = vmatprep.subr.mxu0 0.0
    %v412 = vand.u32 %v109, 4294901760
    %v413 = vsub.f32 %v109, %v412
    %414 = vmatpush1.xpose.msra.mxu0 %v413
    %415 = vmatprep.subr.mxu0 0.0
    %v416 = vand.u32 %v112, 4294901760
    %v417 = vsub.f32 %v112, %v416
    %418 = vmatpush1.xpose.msra.mxu0 %v417
    %419 = vmatprep.subr.mxu0 0.0
    %v420 = vand.u32 %v115, 4294901760
    %v421 = vsub.f32 %v115, %v420
    %422 = vmatpush1.xpose.msra.mxu0 %v421
    %423 = vmatprep.subr.mxu0 0.0
    %424 = vmatpush1.xpose.msra.mxu0 0.0
    %425 = vmatprep.subr.mxu0 0.0
    %426 = vmatpush1.xpose.msra.mxu0 0.0
    %427 = vmatprep.subr.mxu0 0.0
    %428 = vmatpush1.xpose.msra.mxu0 0.0
    %429 = vmatprep.subr.mxu0 0.0
    %430 = vmatpush1.xpose.msra.mxu0 0.0
    %431 = vmatprep.subr.mxu0 0.0
    %432 = vmatpush1.xpose.msra.mxu0 0.0
    %433 = vmatprep.subr.mxu0 0.0
    %434 = vmatpush1.xpose.msra.mxu0 0.0
    %435 = vmatprep.subr.mxu0 0.0
    %436 = vmatpush1.xpose.msra.mxu0 0.0
    %437 = vmatprep.subr.mxu0 0.0
    %438 = vmatpush1.xpose.msra.mxu0 0.0
    %439 = vmatprep.subr.mxu0 0.0
    %440 = vmatpush1.xpose.msra.mxu0 0.0
    %441 = vmatprep.subr.mxu0 0.0
    %442 = vmatpush1.xpose.msra.mxu0 0.0
    %443 = vmatprep.subr.mxu0 0.0
    %444 = vmatpush1.xpose.msra.mxu0 0.0
    %445 = vmatprep.subr.mxu0 0.0
    %446 = vmatpush1.xpose.msra.mxu0 0.0
    %447 = vmatprep.subr.mxu0 0.0
    %448 = vmatpush1.xpose.msra.mxu0 0.0
    %449 = vmatprep.subr.mxu0 0.0
    %450 = vmatpush1.xpose.msra.mxu0 0.0
    %451 = vmatprep.subr.mxu0 0.0
    %452 = vmatpush1.xpose.msra.mxu0 0.0
    %453 = vmatprep.subr.mxu0 0.0
    %454 = vmatpush1.xpose.msra.mxu0 0.0
    %455 = vmatprep.mubr.f32.mxu0 0.0
    %v456 = vand.u32 %v67, 4294901760
    %v457 = vsub.f32 %v67, %v456
    %458 = vmatmul.mubr.f32.gmra.mrb[0].mxu0 %v457
    %v459 = vpop.f32.mrb[0].mxu0
    %v460 = vadd.f32 %v356, %v459
    %v461 = vpop.f32.mrb[0].mxu0
    %462 = vdwg.mxu0
    %463 = vmatprep.subr.mxu0 0.0
    %v464 = vand.u32 %v70, 4294901760
    %465 = vmatpush1.xpose.msra.mxu0 %v464
    %466 = vmatprep.subr.mxu0 0.0
    %v467 = vand.u32 %v73, 4294901760
    %468 = vmatpush1.xpose.msra.mxu0 %v467
    %469 = vmatprep.subr.mxu0 0.0
    %v470 = vand.u32 %v76, 4294901760
    %471 = vmatpush1.xpose.msra.mxu0 %v470
    %472 = vmatprep.subr.mxu0 0.0
    %v473 = vand.u32 %v79, 4294901760
    %474 = vmatpush1.xpose.msra.mxu0 %v473
    %475 = vmatprep.subr.mxu0 0.0
    %v476 = vand.u32 %v82, 4294901760
    %477 = vmatpush1.xpose.msra.mxu0 %v476
    %478 = vmatprep.subr.mxu0 0.0
    %v479 = vand.u32 %v85, 4294901760
    %480 = vmatpush1.xpose.msra.mxu0 %v479
    %481 = vmatprep.subr.mxu0 0.0
    %v482 = vand.u32 %v88, 4294901760
    %483 = vmatpush1.xpose.msra.mxu0 %v482
    %484 = vmatprep.subr.mxu0 0.0
    %v485 = vand.u32 %v91, 4294901760
    %486 = vmatpush1.xpose.msra.mxu0 %v485
    %487 = vmatprep.subr.mxu0 0.0
    %v488 = vand.u32 %v94, 4294901760
    %489 = vmatpush1.xpose.msra.mxu0 %v488
    %490 = vmatprep.subr.mxu0 0.0
    %v491 = vand.u32 %v97, 4294901760
    %492 = vmatpush1.xpose.msra.mxu0 %v491
    %493 = vmatprep.subr.mxu0 0.0
    %v494 = vand.u32 %v100, 4294901760
    %495 = vmatpush1.xpose.msra.mxu0 %v494
    %496 = vmatprep.subr.mxu0 0.0
    %v497 = vand.u32 %v103, 4294901760
    %498 = vmatpush1.xpose.msra.mxu0 %v497
    %499 = vmatprep.subr.mxu0 0.0
    %v500 = vand.u32 %v106, 4294901760
    %501 = vmatpush1.xpose.msra.mxu0 %v500
    %502 = vmatprep.subr.mxu0 0.0
    %v503 = vand.u32 %v109, 4294901760
    %504 = vmatpush1.xpose.msra.mxu0 %v503
    %505 = vmatprep.subr.mxu0 0.0
    %v506 = vand.u32 %v112, 4294901760
    %507 = vmatpush1.xpose.msra.mxu0 %v506
    %508 = vmatprep.subr.mxu0 0.0
    %v509 = vand.u32 %v115, 4294901760
    %510 = vmatpush1.xpose.msra.mxu0 %v509
    %511 = vmatprep.subr.mxu0 0.0
    %512 = vmatpush1.xpose.msra.mxu0 0.0
    %513 = vmatprep.subr.mxu0 0.0
    %514 = vmatpush1.xpose.msra.mxu0 0.0
    %515 = vmatprep.subr.mxu0 0.0
    %516 = vmatpush1.xpose.msra.mxu0 0.0
    %517 = vmatprep.subr.mxu0 0.0
    %518 = vmatpush1.xpose.msra.mxu0 0.0
    %519 = vmatprep.subr.mxu0 0.0
    %520 = vmatpush1.xpose.msra.mxu0 0.0
    %521 = vmatprep.subr.mxu0 0.0
    %522 = vmatpush1.xpose.msra.mxu0 0.0
    %523 = vmatprep.subr.mxu0 0.0
    %524 = vmatpush1.xpose.msra.mxu0 0.0
    %525 = vmatprep.subr.mxu0 0.0
    %526 = vmatpush1.xpose.msra.mxu0 0.0
    %527 = vmatprep.subr.mxu0 0.0
    %528 = vmatpush1.xpose.msra.mxu0 0.0
    %529 = vmatprep.subr.mxu0 0.0
    %530 = vmatpush1.xpose.msra.mxu0 0.0
    %531 = vmatprep.subr.mxu0 0.0
    %532 = vmatpush1.xpose.msra.mxu0 0.0
    %533 = vmatprep.subr.mxu0 0.0
    %534 = vmatpush1.xpose.msra.mxu0 0.0
    %535 = vmatprep.subr.mxu0 0.0
    %536 = vmatpush1.xpose.msra.mxu0 0.0
    %537 = vmatprep.subr.mxu0 0.0
    %538 = vmatpush1.xpose.msra.mxu0 0.0
    %539 = vmatprep.subr.mxu0 0.0
    %540 = vmatpush1.xpose.msra.mxu0 0.0
    %541 = vmatprep.subr.mxu0 0.0
    %542 = vmatpush1.xpose.msra.mxu0 0.0
    %543 = vmatprep.mubr.f32.mxu0 0.0
    %v544 = vand.u32 %v67, 4294901760
    %v545 = vsub.f32 %v67, %v544
    %v546 = vand.u32 %v545, 4294901760
    %547 = vmatmul.mubr.f32.gmra.mrb[0].mxu0 %v546
    %v548 = vpop.f32.mrb[0].mxu0
    %v549 = vadd.f32 %v460, %v548
    %v550 = vpop.f32.mrb[0].mxu0
    %551 = vdwg.mxu0
    %552 = vmatprep.subr.mxu0 0.0
    %v553 = vand.u32 %v70, 4294901760
    %v554 = vsub.f32 %v70, %v553
    %v555 = vand.u32 %v554, 4294901760
    %556 = vmatpush1.xpose.msra.mxu0 %v555
    %557 = vmatprep.subr.mxu0 0.0
    %v558 = vand.u32 %v73, 4294901760
    %v559 = vsub.f32 %v73, %v558
    %v560 = vand.u32 %v559, 4294901760
    %561 = vmatpush1.xpose.msra.mxu0 %v560
    %562 = vmatprep.subr.mxu0 0.0
    %v563 = vand.u32 %v76, 4294901760
    %v564 = vsub.f32 %v76, %v563
    %v565 = vand.u32 %v564, 4294901760
    %566 = vmatpush1.xpose.msra.mxu0 %v565
    %567 = vmatprep.subr.mxu0 0.0
    %v568 = vand.u32 %v79, 4294901760
    %v569 = vsub.f32 %v79, %v568
    %v570 = vand.u32 %v569, 4294901760
    %571 = vmatpush1.xpose.msra.mxu0 %v570
    %572 = vmatprep.subr.mxu0 0.0
    %v573 = vand.u32 %v82, 4294901760
    %v574 = vsub.f32 %v82, %v573
    %v575 = vand.u32 %v574, 4294901760
    %576 = vmatpush1.xpose.msra.mxu0 %v575
    %577 = vmatprep.subr.mxu0 0.0
    %v578 = vand.u32 %v85, 4294901760
    %v579 = vsub.f32 %v85, %v578
    %v580 = vand.u32 %v579, 4294901760
    %581 = vmatpush1.xpose.msra.mxu0 %v580
    %582 = vmatprep.subr.mxu0 0.0
    %v583 = vand.u32 %v88, 4294901760
    %v584 = vsub.f32 %v88, %v583
    %v585 = vand.u32 %v584, 4294901760
    %586 = vmatpush1.xpose.msra.mxu0 %v585
    %587 = vmatprep.subr.mxu0 0.0
    %v588 = vand.u32 %v91, 4294901760
    %v589 = vsub.f32 %v91, %v588
    %v590 = vand.u32 %v589, 4294901760
    %591 = vmatpush1.xpose.msra.mxu0 %v590
    %592 = vmatprep.subr.mxu0 0.0
    %v593 = vand.u32 %v94, 4294901760
    %v594 = vsub.f32 %v94, %v593
    %v595 = vand.u32 %v594, 4294901760
    %596 = vmatpush1.xpose.msra.mxu0 %v595
    %597 = vmatprep.subr.mxu0 0.0
    %v598 = vand.u32 %v97, 4294901760
    %v599 = vsub.f32 %v97, %v598
    %v600 = vand.u32 %v599, 4294901760
    %601 = vmatpush1.xpose.msra.mxu0 %v600
    %602 = vmatprep.subr.mxu0 0.0
    %v603 = vand.u32 %v100, 4294901760
    %v604 = vsub.f32 %v100, %v603
    %v605 = vand.u32 %v604, 4294901760
    %606 = vmatpush1.xpose.msra.mxu0 %v605
    %607 = vmatprep.subr.mxu0 0.0
    %v608 = vand.u32 %v103, 4294901760
    %v609 = vsub.f32 %v103, %v608
    %v610 = vand.u32 %v609, 4294901760
    %611 = vmatpush1.xpose.msra.mxu0 %v610
    %612 = vmatprep.subr.mxu0 0.0
    %v613 = vand.u32 %v106, 4294901760
    %v614 = vsub.f32 %v106, %v613
    %v615 = vand.u32 %v614, 4294901760
    %616 = vmatpush1.xpose.msra.mxu0 %v615
    %617 = vmatprep.subr.mxu0 0.0
    %v618 = vand.u32 %v109, 4294901760
    %v619 = vsub.f32 %v109, %v618
    %v620 = vand.u32 %v619, 4294901760
    %621 = vmatpush1.xpose.msra.mxu0 %v620
    %622 = vmatprep.subr.mxu0 0.0
    %v623 = vand.u32 %v112, 4294901760
    %v624 = vsub.f32 %v112, %v623
    %v625 = vand.u32 %v624, 4294901760
    %626 = vmatpush1.xpose.msra.mxu0 %v625
    %627 = vmatprep.subr.mxu0 0.0
    %v628 = vand.u32 %v115, 4294901760
    %v629 = vsub.f32 %v115, %v628
    %v630 = vand.u32 %v629, 4294901760
    %631 = vmatpush1.xpose.msra.mxu0 %v630
    %632 = vmatprep.subr.mxu0 0.0
    %633 = vmatpush1.xpose.msra.mxu0 0.0
    %634 = vmatprep.subr.mxu0 0.0
    %635 = vmatpush1.xpose.msra.mxu0 0.0
    %636 = vmatprep.subr.mxu0 0.0
    %637 = vmatpush1.xpose.msra.mxu0 0.0
    %638 = vmatprep.subr.mxu0 0.0
    %639 = vmatpush1.xpose.msra.mxu0 0.0
    %640 = vmatprep.subr.mxu0 0.0
    %641 = vmatpush1.xpose.msra.mxu0 0.0
    %642 = vmatprep.subr.mxu0 0.0
    %643 = vmatpush1.xpose.msra.mxu0 0.0
    %644 = vmatprep.subr.mxu0 0.0
    %645 = vmatpush1.xpose.msra.mxu0 0.0
    %646 = vmatprep.subr.mxu0 0.0
    %647 = vmatpush1.xpose.msra.mxu0 0.0
    %648 = vmatprep.subr.mxu0 0.0
    %649 = vmatpush1.xpose.msra.mxu0 0.0
    %650 = vmatprep.subr.mxu0 0.0
    %651 = vmatpush1.xpose.msra.mxu0 0.0
    %652 = vmatprep.subr.mxu0 0.0
    %653 = vmatpush1.xpose.msra.mxu0 0.0
    %654 = vmatprep.subr.mxu0 0.0
    %655 = vmatpush1.xpose.msra.mxu0 0.0
    %656 = vmatprep.subr.mxu0 0.0
    %657 = vmatpush1.xpose.msra.mxu0 0.0
    %658 = vmatprep.subr.mxu0 0.0
    %659 = vmatpush1.xpose.msra.mxu0 0.0
    %660 = vmatprep.subr.mxu0 0.0
    %661 = vmatpush1.xpose.msra.mxu0 0.0
    %662 = vmatprep.subr.mxu0 0.0
    %663 = vmatpush1.xpose.msra.mxu0 0.0
    %664 = vmatprep.mubr.f32.mxu0 0.0
    %v665 = vand.u32 %v67, 4294901760
    %666 = vmatmul.mubr.f32.gmra.mrb[0].mxu0 %v665
    %v667 = vpop.f32.mrb[0].mxu0
    %v668 = vadd.f32 %v549, %v667
    %v669 = vpop.f32.mrb[0].mxu0
    %670 = vdwg.mxu0
    %671 = vmatprep.subr.mxu0 0.0
    %v672 = vand.u32 %v70, 4294901760
    %673 = vmatpush1.xpose.msra.mxu0 %v672
    %674 = vmatprep.subr.mxu0 0.0
    %v675 = vand.u32 %v73, 4294901760
    %676 = vmatpush1.xpose.msra.mxu0 %v675
    %677 = vmatprep.subr.mxu0 0.0
    %v678 = vand.u32 %v76, 4294901760
    %679 = vmatpush1.xpose.msra.mxu0 %v678
    %680 = vmatprep.subr.mxu0 0.0
    %v681 = vand.u32 %v79, 4294901760
    %682 = vmatpush1.xpose.msra.mxu0 %v681
    %683 = vmatprep.subr.mxu0 0.0
    %v684 = vand.u32 %v82, 4294901760
    %685 = vmatpush1.xpose.msra.mxu0 %v684
    %686 = vmatprep.subr.mxu0 0.0
    %v687 = vand.u32 %v85, 4294901760
    %688 = vmatpush1.xpose.msra.mxu0 %v687
    %689 = vmatprep.subr.mxu0 0.0
    %v690 = vand.u32 %v88, 4294901760
    %691 = vmatpush1.xpose.msra.mxu0 %v690
    %692 = vmatprep.subr.mxu0 0.0
    %v693 = vand.u32 %v91, 4294901760
    %694 = vmatpush1.xpose.msra.mxu0 %v693
    %695 = vmatprep.subr.mxu0 0.0
    %v696 = vand.u32 %v94, 4294901760
    %697 = vmatpush1.xpose.msra.mxu0 %v696
    %698 = vmatprep.subr.mxu0 0.0
    %v699 = vand.u32 %v97, 4294901760
    %700 = vmatpush1.xpose.msra.mxu0 %v699
    %701 = vmatprep.subr.mxu0 0.0
    %v702 = vand.u32 %v100, 4294901760
    %703 = vmatpush1.xpose.msra.mxu0 %v702
    %704 = vmatprep.subr.mxu0 0.0
    %v705 = vand.u32 %v103, 4294901760
    %706 = vmatpush1.xpose.msra.mxu0 %v705
    %707 = vmatprep.subr.mxu0 0.0
    %v708 = vand.u32 %v106, 4294901760
    %709 = vmatpush1.xpose.msra.mxu0 %v708
    %710 = vmatprep.subr.mxu0 0.0
    %v711 = vand.u32 %v109, 4294901760
    %712 = vmatpush1.xpose.msra.mxu0 %v711
    %713 = vmatprep.subr.mxu0 0.0
    %v714 = vand.u32 %v112, 4294901760
    %715 = vmatpush1.xpose.msra.mxu0 %v714
    %716 = vmatprep.subr.mxu0 0.0
    %v717 = vand.u32 %v115, 4294901760
    %718 = vmatpush1.xpose.msra.mxu0 %v717
    %719 = vmatprep.subr.mxu0 0.0
    %720 = vmatpush1.xpose.msra.mxu0 0.0
    %721 = vmatprep.subr.mxu0 0.0
    %722 = vmatpush1.xpose.msra.mxu0 0.0
    %723 = vmatprep.subr.mxu0 0.0
    %724 = vmatpush1.xpose.msra.mxu0 0.0
    %725 = vmatprep.subr.mxu0 0.0
    %726 = vmatpush1.xpose.msra.mxu0 0.0
    %727 = vmatprep.subr.mxu0 0.0
    %728 = vmatpush1.xpose.msra.mxu0 0.0
    %729 = vmatprep.subr.mxu0 0.0
    %730 = vmatpush1.xpose.msra.mxu0 0.0
    %731 = vmatprep.subr.mxu0 0.0
    %732 = vmatpush1.xpose.msra.mxu0 0.0
    %733 = vmatprep.subr.mxu0 0.0
    %734 = vmatpush1.xpose.msra.mxu0 0.0
    %735 = vmatprep.subr.mxu0 0.0
    %736 = vmatpush1.xpose.msra.mxu0 0.0
    %737 = vmatprep.subr.mxu0 0.0
    %738 = vmatpush1.xpose.msra.mxu0 0.0
    %739 = vmatprep.subr.mxu0 0.0
    %740 = vmatpush1.xpose.msra.mxu0 0.0
    %741 = vmatprep.subr.mxu0 0.0
    %742 = vmatpush1.xpose.msra.mxu0 0.0
    %743 = vmatprep.subr.mxu0 0.0
    %744 = vmatpush1.xpose.msra.mxu0 0.0
    %745 = vmatprep.subr.mxu0 0.0
    %746 = vmatpush1.xpose.msra.mxu0 0.0
    %747 = vmatprep.subr.mxu0 0.0
    %748 = vmatpush1.xpose.msra.mxu0 0.0
    %749 = vmatprep.subr.mxu0 0.0
    %750 = vmatpush1.xpose.msra.mxu0 0.0
    %751 = vmatprep.mubr.f32.mxu0 0.0
    %v752 = vand.u32 %v67, 4294901760
    %753 = vmatmul.mubr.f32.gmra.mrb[0].mxu0 %v752
    %v754 = vpop.f32.mrb[0].mxu0
    %v755 = vadd.f32 %v668, %v754
    %v756 = vpop.f32.mrb[0].mxu0
    %757 = vdwg.mxu0
    %s758 = sld [smem:[#allocation2]]
    %v759 = vstv %s758
    %v760 = vadd.f32 %v755, %v759
    %v761 = vtanh.pop %v760
    %v762 = vmul.f32 %v761, %v761
    %v763 = vsub.f32 1.0, %v762
    %s764 = sld [smem:[#allocation5]]
    %v765 = vstv %s764
    %v766 = vmul.f32 %v765, %v763
    %v767 = vadd.f32 %v766, 1.0
    %v768 = vand.u32 2147483647, %v767
    %v769 = vlog2.pop %v768
    %v770 = vmul.f32 %v769, 0.6931472
    %v771 = vadd.f32 %v770, 0.0
    %s772 = sld [smem:[#allocation2 + $0x1]]
    %v773 = vstv %s772
    %v774 = vadd.f32 %v755, %v773
    %s775 = sld [smem:[#allocation5 + $0x1]]
    %v776 = vstv %s775
    %v777 = vmul.f32 %v776, %v761
    %v779 = vrot.slane %v777, 7
    %v781 = vadd.f32 %v774, %v779
    %v782 = vtanh.pop %v781
    %v783 = vmul.f32 %v782, %v782
    %v784 = vsub.f32 1.0, %v783
    %s785 = sld [smem:[#allocation5 + $0x81]]
    %v786 = vstv %s785
    %v787 = vmul.f32 %v786, %v784
    %v788 = vadd.f32 %v787, 1.0
    %v789 = vand.u32 2147483647, %v788
    %v790 = vlog2.pop %v789
    %v791 = vmul.f32 %v790, 0.6931472
    %v793 = vrot.slane %v791, 1
    %v795 = vadd.f32 %v771, %v793
    %s796 = sld [smem:[#allocation2 + $0x2]]
    %v797 = vstv %s796
    %v798 = vadd.f32 %v755, %v797
    %s799 = sld [smem:[#allocation5 + $0x2]]
    %v800 = vstv %s799
    %v801 = vmul.f32 %v800, %v761
    %v803 = vrot.slane %v801, 6
    %v805 = vadd.f32 %v798, %v803
    %s806 = sld [smem:[#allocation5 + $0x82]]
    %v807 = vstv %s806
    %v808 = vmul.f32 %v807, %v782
    %v810 = vrot.slane %v808, 7
    %v812 = vadd.f32 %v805, %v810
    %v813 = vtanh.pop %v812
    %v814 = vmul.f32 %v813, %v813
    %v815 = vsub.f32 1.0, %v814
    %s816 = sld [smem:[#allocation5 + $0x102]]
    %v817 = vstv %s816
    %v818 = vmul.f32 %v817, %v815
    %v819 = vadd.f32 %v818, 1.0
    %v820 = vand.u32 2147483647, %v819
    %v821 = vlog2.pop %v820
    %v822 = vmul.f32 %v821, 0.6931472
    %v824 = vrot.slane %v822, 2
    %v826 = vadd.f32 %v795, %v824
    %vm827 = vcmask 1040384
    %v828 = vsel %vm827, %v761, %v782
    %vm829 = vcmask 1041408
    %v830 = vsel %vm829, %v828, %v813
    %vm831 = vcmask 1042432
    %v832 = vsel %vm831, %v830, 0.0
    %833 = vxpose.xlu0.b32.start [1/16] %v832, 128
    %834 = vxpose.xlu0.b32.cont [2/16] 0.0, 128
    %835 = vxpose.xlu0.b32.cont [3/16] 0.0, 128
    %836 = vxpose.xlu0.b32.cont [4/16] 0.0, 128
    %837 = vxpose.xlu0.b32.cont [5/16] 0.0, 128
    %838 = vxpose.xlu0.b32.cont [6/16] 0.0, 128
    %839 = vxpose.xlu0.b32.cont [7/16] 0.0, 128
    %840 = vxpose.xlu0.b32.cont [8/16] 0.0, 128
    %841 = vxpose.xlu0.b32.cont [9/16] 0.0, 128
    %842 = vxpose.xlu0.b32.cont [10/16] 0.0, 128
    %843 = vxpose.xlu0.b32.cont [11/16] 0.0, 128
    %844 = vxpose.xlu0.b32.cont [12/16] 0.0, 128
    %845 = vxpose.xlu0.b32.cont [13/16] 0.0, 128
    %846 = vxpose.xlu0.b32.cont [14/16] 0.0, 128
    %847 = vxpose.xlu0.b32.cont [15/16] 0.0, 128
    %848 = vxpose.xlu0.b32.end [16/16] 0.0, 128
    %v849 = vpop.trf.xlu0
    %v850 = vpop.trf.xlu0
    %v851 = vpop.trf.xlu0
    %v852 = vpop.trf.xlu0
    %v853 = vpop.trf.xlu0
    %v854 = vpop.trf.xlu0
    %v855 = vpop.trf.xlu0
    %v856 = vpop.trf.xlu0
    %v857 = vpop.trf.xlu0
    %v858 = vpop.trf.xlu0
    %v859 = vpop.trf.xlu0
    %v860 = vpop.trf.xlu0
    %v861 = vpop.trf.xlu0
    %v862 = vpop.trf.xlu0
    %v863 = vpop.trf.xlu0
    %v864 = vpop.trf.xlu0
    %v865 = vld [vmem:[%s2] sm:$0xff]
    %vm866 = vcmask 64512
    %v868 = vsel %vm866, %v849, 0
    %v871 = vsel %vm866, %v850, 0
    %v874 = vsel %vm866, %v851, 0
    %v877 = vsel %vm866, %v852, 0
    %v880 = vsel %vm866, %v853, 0
    %v883 = vsel %vm866, %v854, 0
    %v886 = vsel %vm866, %v855, 0
    %v889 = vsel %vm866, %v856, 0
    %v892 = vsel %vm866, %v857, 0
    %v895 = vsel %vm866, %v858, 0
    %v898 = vsel %vm866, %v859, 0
    %v901 = vsel %vm866, %v860, 0
    %v904 = vsel %vm866, %v861, 0
    %v907 = vsel %vm866, %v862, 0
    %v910 = vsel %vm866, %v863, 0
    %v913 = vsel %vm866, %v864, 0
    %915 = vmatprep.subr.mxu0 0.0
    %v916 = vand.u32 %v865, 4294901760
    %917 = vmatpush1.msra.mxu0 %v916
    %918 = vmatprep.subr.mxu0 0.0
    %919 = vmatpush1.msra.mxu0 0.0
    %920 = vmatprep.subr.mxu0 0.0
    %921 = vmatpush1.msra.mxu0 0.0
    %922 = vmatprep.subr.mxu0 0.0
    %923 = vmatpush1.msra.mxu0 0.0
    %924 = vmatprep.subr.mxu0 0.0
    %925 = vmatpush1.msra.mxu0 0.0
    %926 = vmatprep.subr.mxu0 0.0
    %927 = vmatpush1.msra.mxu0 0.0
    %928 = vmatprep.subr.mxu0 0.0
    %929 = vmatpush1.msra.mxu0 0.0
    %930 = vmatprep.subr.mxu0 0.0
    %931 = vmatpush1.msra.mxu0 0.0
    %932 = vmatprep.subr.mxu0 0.0
    %933 = vmatpush1.msra.mxu0 0.0
    %934 = vmatprep.subr.mxu0 0.0
    %935 = vmatpush1.msra.mxu0 0.0
    %936 = vmatprep.subr.mxu0 0.0
    %937 = vmatpush1.msra.mxu0 0.0
    %938 = vmatprep.subr.mxu0 0.0
    %939 = vmatpush1.msra.mxu0 0.0
    %940 = vmatprep.subr.mxu0 0.0
    %941 = vmatpush1.msra.mxu0 0.0
    %942 = vmatprep.subr.mxu0 0.0
    %943 = vmatpush1.msra.mxu0 0.0
    %944 = vmatprep.subr.mxu0 0.0
    %945 = vmatpush1.msra.mxu0 0.0
    %946 = vmatprep.subr.mxu0 0.0
    %947 = vmatpush1.msra.mxu0 0.0
    %948 = vmatprep.subr.mxu0 0.0
    %949 = vmatpush1.msra.mxu0 0.0
    %950 = vmatprep.subr.mxu0 0.0
    %951 = vmatpush1.msra.mxu0 0.0
    %952 = vmatprep.subr.mxu0 0.0
    %953 = vmatpush1.msra.mxu0 0.0
    %954 = vmatprep.subr.mxu0 0.0
    %955 = vmatpush1.msra.mxu0 0.0
    %956 = vmatprep.subr.mxu0 0.0
    %957 = vmatpush1.msra.mxu0 0.0
    %958 = vmatprep.subr.mxu0 0.0
    %959 = vmatpush1.msra.mxu0 0.0
    %960 = vmatprep.subr.mxu0 0.0
    %961 = vmatpush1.msra.mxu0 0.0
    %962 = vmatprep.subr.mxu0 0.0
    %963 = vmatpush1.msra.mxu0 0.0
    %964 = vmatprep.subr.mxu0 0.0
    %965 = vmatpush1.msra.mxu0 0.0
    %966 = vmatprep.subr.mxu0 0.0
    %967 = vmatpush1.msra.mxu0 0.0
    %968 = vmatprep.subr.mxu0 0.0
    %969 = vmatpush1.msra.mxu0 0.0
    %970 = vmatprep.subr.mxu0 0.0
    %971 = vmatpush1.msra.mxu0 0.0
    %972 = vmatprep.subr.mxu0 0.0
    %973 = vmatpush1.msra.mxu0 0.0
    %974 = vmatprep.subr.mxu0 0.0
    %975 = vmatpush1.msra.mxu0 0.0
    %976 = vmatprep.subr.mxu0 0.0
    %977 = vmatpush1.msra.mxu0 0.0
    %978 = vmatprep.subr.mxu0 0.0
    %979 = vmatpush1.msra.mxu0 0.0
    %980 = vmatprep.mubr.f32.mxu0 0.0
    %v981 = vand.u32 %v868, 4294901760
    %v982 = vsub.f32 %v868, %v981
    %v983 = vand.u32 %v982, 4294901760
    %v984 = vsub.f32 %v982, %v983
    %v985 = vand.u32 %v984, 4294901760
    %986 = vmatmul.mubr.f32.gmra.mrb[0].mxu0 %v985
    %v987 = vpop.f32.mrb[0].mxu0
    %v988 = vadd.f32 0.0, %v987
    %v989 = vpop.f32.mrb[0].mxu0
    %990 = vmatprep.mubr.f32.mxu0 0.0
    %v991 = vand.u32 %v871, 4294901760
    %v992 = vsub.f32 %v871, %v991
    %v993 = vand.u32 %v992, 4294901760
    %v994 = vsub.f32 %v992, %v993
    %v995 = vand.u32 %v994, 4294901760
    %996 = vmatmul.mubr.f32.gmra.mrb[0].mxu0 %v995
    %v997 = vpop.f32.mrb[0].mxu0
    %v998 = vadd.f32 0.0, %v997
    %v999 = vpop.f32.mrb[0].mxu0
    %1000 = vmatprep.mubr.f32.mxu0 0.0
    %v1001 = vand.u32 %v874, 4294901760
    %v1002 = vsub.f32 %v874, %v1001
    %v1003 = vand.u32 %v1002, 4294901760
    %v1004 = vsub.f32 %v1002, %v1003
    %v1005 = vand.u32 %v1004, 4294901760
    %1006 = vmatmul.mubr.f32.gmra.mrb[0].mxu0 %v1005
    %v1007 = vpop.f32.mrb[0].mxu0
    %v1008 = vadd.f32 0.0, %v1007
    %v1009 = vpop.f32.mrb[0].mxu0
    %1010 = vmatprep.mubr.f32.mxu0 0.0
    %v1011 = vand.u32 %v877, 4294901760
    %v1012 = vsub.f32 %v877, %v1011
    %v1013 = vand.u32 %v1012, 4294901760
    %v1014 = vsub.f32 %v1012, %v1013
    %v1015 = vand.u32 %v1014, 4294901760
    %1016 = vmatmul.mubr.f32.gmra.mrb[0].mxu0 %v1015
    %v1017 = vpop.f32.mrb[0].mxu0
    %v1018 = vadd.f32 0.0, %v1017
    %v1019 = vpop.f32.mrb[0].mxu0
    %1020 = vmatprep.mubr.f32.mxu0 0.0
    %v1021 = vand.u32 %v880, 4294901760
    %v1022 = vsub.f32 %v880, %v1021
    %v1023 = vand.u32 %v1022, 4294901760
    %v1024 = vsub.f32 %v1022, %v1023
    %v1025 = vand.u32 %v1024, 4294901760
    %1026 = vmatmul.mubr.f32.gmra.mrb[0].mxu0 %v1025
    %v1027 = vpop.f32.mrb[0].mxu0
    %v1028 = vadd.f32 0.0, %v1027
    %v1029 = vpop.f32.mrb[0].mxu0
    %1030 = vmatprep.mubr.f32.mxu0 0.0
    %v1031 = vand.u32 %v883, 4294901760
    %v1032 = vsub.f32 %v883, %v1031
    %v1033 = vand.u32 %v1032, 4294901760
    %v1034 = vsub.f32 %v1032, %v1033
    %v1035 = vand.u32 %v1034, 4294901760
    %1036 = vmatmul.mubr.f32.gmra.mrb[0].mxu0 %v1035
    %v1037 = vpop.f32.mrb[0].mxu0
    %v1038 = vadd.f32 0.0, %v1037
    %v1039 = vpop.f32.mrb[0].mxu0
    %1040 = vmatprep.mubr.f32.mxu0 0.0
    %v1041 = vand.u32 %v886, 4294901760
    %v1042 = vsub.f32 %v886, %v1041
    %v1043 = vand.u32 %v1042, 4294901760
    %v1044 = vsub.f32 %v1042, %v1043
    %v1045 = vand.u32 %v1044, 4294901760
    %1046 = vmatmul.mubr.f32.gmra.mrb[0].mxu0 %v1045
    %v1047 = vpop.f32.mrb[0].mxu0
    %v1048 = vadd.f32 0.0, %v1047
    %v1049 = vpop.f32.mrb[0].mxu0
    %1050 = vmatprep.mubr.f32.mxu0 0.0
    %v1051 = vand.u32 %v889, 4294901760
    %v1052 = vsub.f32 %v889, %v1051
    %v1053 = vand.u32 %v1052, 4294901760
    %v1054 = vsub.f32 %v1052, %v1053
    %v1055 = vand.u32 %v1054, 4294901760
    %1056 = vmatmul.mubr.f32.gmra.mrb[0].mxu0 %v1055
    %v1057 = vpop.f32.mrb[0].mxu0
    %v1058 = vadd.f32 0.0, %v1057
    %v1059 = vpop.f32.mrb[0].mxu0
    %1060 = vmatprep.mubr.f32.mxu0 0.0
    %v1061 = vand.u32 %v892, 4294901760
    %v1062 = vsub.f32 %v892, %v1061
    %v1063 = vand.u32 %v1062, 4294901760
    %v1064 = vsub.f32 %v1062, %v1063
    %v1065 = vand.u32 %v1064, 4294901760
    %1066 = vmatmul.mubr.f32.gmra.mrb[0].mxu0 %v1065
    %v1067 = vpop.f32.mrb[0].mxu0
    %v1068 = vadd.f32 0.0, %v1067
    %v1069 = vpop.f32.mrb[0].mxu0
    %1070 = vmatprep.mubr.f32.mxu0 0.0
    %v1071 = vand.u32 %v895, 4294901760
    %v1072 = vsub.f32 %v895, %v1071
    %v1073 = vand.u32 %v1072, 4294901760
    %v1074 = vsub.f32 %v1072, %v1073
    %v1075 = vand.u32 %v1074, 4294901760
    %1076 = vmatmul.mubr.f32.gmra.mrb[0].mxu0 %v1075
    %v1077 = vpop.f32.mrb[0].mxu0
    %v1078 = vadd.f32 0.0, %v1077
    %v1079 = vpop.f32.mrb[0].mxu0
    %1080 = vmatprep.mubr.f32.mxu0 0.0
    %v1081 = vand.u32 %v898, 4294901760
    %v1082 = vsub.f32 %v898, %v1081
    %v1083 = vand.u32 %v1082, 4294901760
    %v1084 = vsub.f32 %v1082, %v1083
    %v1085 = vand.u32 %v1084, 4294901760
    %1086 = vmatmul.mubr.f32.gmra.mrb[0].mxu0 %v1085
    %v1087 = vpop.f32.mrb[0].mxu0
    %v1088 = vadd.f32 0.0, %v1087
    %v1089 = vpop.f32.mrb[0].mxu0
    %1090 = vmatprep.mubr.f32.mxu0 0.0
    %v1091 = vand.u32 %v901, 4294901760
    %v1092 = vsub.f32 %v901, %v1091
    %v1093 = vand.u32 %v1092, 4294901760
    %v1094 = vsub.f32 %v1092, %v1093
    %v1095 = vand.u32 %v1094, 4294901760
    %1096 = vmatmul.mubr.f32.gmra.mrb[0].mxu0 %v1095
    %v1097 = vpop.f32.mrb[0].mxu0
    %v1098 = vadd.f32 0.0, %v1097
    %v1099 = vpop.f32.mrb[0].mxu0
    %1100 = vmatprep.mubr.f32.mxu0 0.0
    %v1101 = vand.u32 %v904, 4294901760
    %v1102 = vsub.f32 %v904, %v1101
    %v1103 = vand.u32 %v1102, 4294901760
    %v1104 = vsub.f32 %v1102, %v1103
    %v1105 = vand.u32 %v1104, 4294901760
    %1106 = vmatmul.mubr.f32.gmra.mrb[0].mxu0 %v1105
    %v1107 = vpop.f32.mrb[0].mxu0
    %v1108 = vadd.f32 0.0, %v1107
    %v1109 = vpop.f32.mrb[0].mxu0
    %1110 = vmatprep.mubr.f32.mxu0 0.0
    %v1111 = vand.u32 %v907, 4294901760
    %v1112 = vsub.f32 %v907, %v1111
    %v1113 = vand.u32 %v1112, 4294901760
    %v1114 = vsub.f32 %v1112, %v1113
    %v1115 = vand.u32 %v1114, 4294901760
    %1116 = vmatmul.mubr.f32.gmra.mrb[0].mxu0 %v1115
    %v1117 = vpop.f32.mrb[0].mxu0
    %v1118 = vadd.f32 0.0, %v1117
    %v1119 = vpop.f32.mrb[0].mxu0
    %1120 = vmatprep.mubr.f32.mxu0 0.0
    %v1121 = vand.u32 %v910, 4294901760
    %v1122 = vsub.f32 %v910, %v1121
    %v1123 = vand.u32 %v1122, 4294901760
    %v1124 = vsub.f32 %v1122, %v1123
    %v1125 = vand.u32 %v1124, 4294901760
    %1126 = vmatmul.mubr.f32.gmra.mrb[0].mxu0 %v1125
    %v1127 = vpop.f32.mrb[0].mxu0
    %v1128 = vadd.f32 0.0, %v1127
    %v1129 = vpop.f32.mrb[0].mxu0
    %1130 = vmatprep.mubr.f32.mxu0 0.0
    %v1131 = vand.u32 %v913, 4294901760
    %v1132 = vsub.f32 %v913, %v1131
    %v1133 = vand.u32 %v1132, 4294901760
    %v1134 = vsub.f32 %v1132, %v1133
    %v1135 = vand.u32 %v1134, 4294901760
    %1136 = vmatmul.mubr.f32.gmra.mrb[0].mxu0 %v1135
    %v1137 = vpop.f32.mrb[0].mxu0
    %v1138 = vadd.f32 0.0, %v1137
    %v1139 = vpop.f32.mrb[0].mxu0
    %1140 = vdwg.mxu0
    %1141 = vmatprep.subr.mxu0 0.0
    %v1142 = vand.u32 %v865, 4294901760
    %v1143 = vsub.f32 %v865, %v1142
    %v1144 = vand.u32 %v1143, 4294901760
    %v1145 = vsub.f32 %v1143, %v1144
    %v1146 = vand.u32 %v1145, 4294901760
    %1147 = vmatpush1.msra.mxu0 %v1146
    %1148 = vmatprep.subr.mxu0 0.0
    %1149 = vmatpush1.msra.mxu0 0.0
    %1150 = vmatprep.subr.mxu0 0.0
    %1151 = vmatpush1.msra.mxu0 0.0
    %1152 = vmatprep.subr.mxu0 0.0
    %1153 = vmatpush1.msra.mxu0 0.0
    %1154 = vmatprep.subr.mxu0 0.0
    %1155 = vmatpush1.msra.mxu0 0.0
    %1156 = vmatprep.subr.mxu0 0.0
    %1157 = vmatpush1.msra.mxu0 0.0
    %1158 = vmatprep.subr.mxu0 0.0
    %1159 = vmatpush1.msra.mxu0 0.0
    %1160 = vmatprep.subr.mxu0 0.0
    %1161 = vmatpush1.msra.mxu0 0.0
    %1162 = vmatprep.subr.mxu0 0.0
    %1163 = vmatpush1.msra.mxu0 0.0
    %1164 = vmatprep.subr.mxu0 0.0
    %1165 = vmatpush1.msra.mxu0 0.0
    %1166 = vmatprep.subr.mxu0 0.0
    %1167 = vmatpush1.msra.mxu0 0.0
    %1168 = vmatprep.subr.mxu0 0.0
    %1169 = vmatpush1.msra.mxu0 0.0
    %1170 = vmatprep.subr.mxu0 0.0
    %1171 = vmatpush1.msra.mxu0 0.0
    %1172 = vmatprep.subr.mxu0 0.0
    %1173 = vmatpush1.msra.mxu0 0.0
    %1174 = vmatprep.subr.mxu0 0.0
    %1175 = vmatpush1.msra.mxu0 0.0
    %1176 = vmatprep.subr.mxu0 0.0
    %1177 = vmatpush1.msra.mxu0 0.0
    %1178 = vmatprep.subr.mxu0 0.0
    %1179 = vmatpush1.msra.mxu0 0.0
    %1180 = vmatprep.subr.mxu0 0.0
    %1181 = vmatpush1.msra.mxu0 0.0
    %1182 = vmatprep.subr.mxu0 0.0
    %1183 = vmatpush1.msra.mxu0 0.0
    %1184 = vmatprep.subr.mxu0 0.0
    %1185 = vmatpush1.msra.mxu0 0.0
    %1186 = vmatprep.subr.mxu0 0.0
    %1187 = vmatpush1.msra.mxu0 0.0
    %1188 = vmatprep.subr.mxu0 0.0
    %1189 = vmatpush1.msra.mxu0 0.0
    %1190 = vmatprep.subr.mxu0 0.0
    %1191 = vmatpush1.msra.mxu0 0.0
    %1192 = vmatprep.subr.mxu0 0.0
    %1193 = vmatpush1.msra.mxu0 0.0
    %1194 = vmatprep.subr.mxu0 0.0
    %1195 = vmatpush1.msra.mxu0 0.0
    %1196 = vmatprep.subr.mxu0 0.0
    %1197 = vmatpush1.msra.mxu0 0.0
    %1198 = vmatprep.subr.mxu0 0.0
    %1199 = vmatpush1.msra.mxu0 0.0
    %1200 = vmatprep.subr.mxu0 0.0
    %1201 = vmatpush1.msra.mxu0 0.0
    %1202 = vmatprep.subr.mxu0 0.0
    %1203 = vmatpush1.msra.mxu0 0.0
    %1204 = vmatprep.subr.mxu0 0.0
    %1205 = vmatpush1.msra.mxu0 0.0
    %1206 = vmatprep.subr.mxu0 0.0
    %1207 = vmatpush1.msra.mxu0 0.0
    %1208 = vmatprep.subr.mxu0 0.0
    %1209 = vmatpush1.msra.mxu0 0.0
    %1210 = vmatprep.mubr.f32.mxu0 0.0
    %v1211 = vand.u32 %v868, 4294901760
    %1212 = vmatmul.mubr.f32.gmra.mrb[0].mxu0 %v1211
    %v1213 = vpop.f32.mrb[0].mxu0
    %v1214 = vadd.f32 %v988, %v1213
    %v1215 = vpop.f32.mrb[0].mxu0
    %1216 = vmatprep.mubr.f32.mxu0 0.0
    %v1217 = vand.u32 %v871, 4294901760
    %1218 = vmatmul.mubr.f32.gmra.mrb[0].mxu0 %v1217
    %v1219 = vpop.f32.mrb[0].mxu0
    %v1220 = vadd.f32 %v998, %v1219
    %v1221 = vpop.f32.mrb[0].mxu0
    %1222 = vmatprep.mubr.f32.mxu0 0.0
    %v1223 = vand.u32 %v874, 4294901760
    %1224 = vmatmul.mubr.f32.gmra.mrb[0].mxu0 %v1223
    %v1225 = vpop.f32.mrb[0].mxu0
    %v1226 = vadd.f32 %v1008, %v1225
    %v1227 = vpop.f32.mrb[0].mxu0
    %1228 = vmatprep.mubr.f32.mxu0 0.0
    %v1229 = vand.u32 %v877, 4294901760
    %1230 = vmatmul.mubr.f32.gmra.mrb[0].mxu0 %v1229
    %v1231 = vpop.f32.mrb[0].mxu0
    %v1232 = vadd.f32 %v1018, %v1231
    %v1233 = vpop.f32.mrb[0].mxu0
    %1234 = vmatprep.mubr.f32.mxu0 0.0
    %v1235 = vand.u32 %v880, 4294901760
    %1236 = vmatmul.mubr.f32.gmra.mrb[0].mxu0 %v1235
    %v1237 = vpop.f32.mrb[0].mxu0
    %v1238 = vadd.f32 %v1028, %v1237
    %v1239 = vpop.f32.mrb[0].mxu0
    %1240 = vmatprep.mubr.f32.mxu0 0.0
    %v1241 = vand.u32 %v883, 4294901760
    %1242 = vmatmul.mubr.f32.gmra.mrb[0].mxu0 %v1241
    %v1243 = vpop.f32.mrb[0].mxu0
    %v1244 = vadd.f32 %v1038, %v1243
    %v1245 = vpop.f32.mrb[0].mxu0
    %1246 = vmatprep.mubr.f32.mxu0 0.0
    %v1247 = vand.u32 %v886, 4294901760
    %1248 = vmatmul.mubr.f32.gmra.mrb[0].mxu0 %v1247
    %v1249 = vpop.f32.mrb[0].mxu0
    %v1250 = vadd.f32 %v1048, %v1249
    %v1251 = vpop.f32.mrb[0].mxu0
    %1252 = vmatprep.mubr.f32.mxu0 0.0
    %v1253 = vand.u32 %v889, 4294901760
    %1254 = vmatmul.mubr.f32.gmra.mrb[0].mxu0 %v1253
    %v1255 = vpop.f32.mrb[0].mxu0
    %v1256 = vadd.f32 %v1058, %v1255
    %v1257 = vpop.f32.mrb[0].mxu0
    %1258 = vmatprep.mubr.f32.mxu0 0.0
    %v1259 = vand.u32 %v892, 4294901760
    %1260 = vmatmul.mubr.f32.gmra.mrb[0].mxu0 %v1259
    %v1261 = vpop.f32.mrb[0].mxu0
    %v1262 = vadd.f32 %v1068, %v1261
    %v1263 = vpop.f32.mrb[0].mxu0
    %1264 = vmatprep.mubr.f32.mxu0 0.0
    %v1265 = vand.u32 %v895, 4294901760
    %1266 = vmatmul.mubr.f32.gmra.mrb[0].mxu0 %v1265
    %v1267 = vpop.f32.mrb[0].mxu0
    %v1268 = vadd.f32 %v1078, %v1267
    %v1269 = vpop.f32.mrb[0].mxu0
    %1270 = vmatprep.mubr.f32.mxu0 0.0
    %v1271 = vand.u32 %v898, 4294901760
    %1272 = vmatmul.mubr.f32.gmra.mrb[0].mxu0 %v1271
    %v1273 = vpop.f32.mrb[0].mxu0
    %v1274 = vadd.f32 %v1088, %v1273
    %v1275 = vpop.f32.mrb[0].mxu0
    %1276 = vmatprep.mubr.f32.mxu0 0.0
    %v1277 = vand.u32 %v901, 4294901760
    %1278 = vmatmul.mubr.f32.gmra.mrb[0].mxu0 %v1277
    %v1279 = vpop.f32.mrb[0].mxu0
    %v1280 = vadd.f32 %v1098, %v1279
    %v1281 = vpop.f32.mrb[0].mxu0
    %1282 = vmatprep.mubr.f32.mxu0 0.0
    %v1283 = vand.u32 %v904, 4294901760
    %1284 = vmatmul.mubr.f32.gmra.mrb[0].mxu0 %v1283
    %v1285 = vpop.f32.mrb[0].mxu0
    %v1286 = vadd.f32 %v1108, %v1285
    %v1287 = vpop.f32.mrb[0].mxu0
    %1288 = vmatprep.mubr.f32.mxu0 0.0
    %v1289 = vand.u32 %v907, 4294901760
    %1290 = vmatmul.mubr.f32.gmra.mrb[0].mxu0 %v1289
    %v1291 = vpop.f32.mrb[0].mxu0
    %v1292 = vadd.f32 %v1118, %v1291
    %v1293 = vpop.f32.mrb[0].mxu0
    %1294 = vmatprep.mubr.f32.mxu0 0.0
    %v1295 = vand.u32 %v910, 4294901760
    %1296 = vmatmul.mubr.f32.gmra.mrb[0].mxu0 %v1295
    %v1297 = vpop.f32.mrb[0].mxu0
    %v1298 = vadd.f32 %v1128, %v1297
    %v1299 = vpop.f32.mrb[0].mxu0
    %1300 = vmatprep.mubr.f32.mxu0 0.0
    %v1301 = vand.u32 %v913, 4294901760
    %1302 = vmatmul.mubr.f32.gmra.mrb[0].mxu0 %v1301
    %v1303 = vpop.f32.mrb[0].mxu0
    %v1304 = vadd.f32 %v1138, %v1303
    %v1305 = vpop.f32.mrb[0].mxu0
    %1306 = vdwg.mxu0
    %1307 = vmatprep.subr.mxu0 0.0
    %v1308 = vand.u32 %v865, 4294901760
    %v1309 = vsub.f32 %v865, %v1308
    %1310 = vmatpush1.msra.mxu0 %v1309
    %1311 = vmatprep.subr.mxu0 0.0
    %1312 = vmatpush1.msra.mxu0 0.0
    %1313 = vmatprep.subr.mxu0 0.0
    %1314 = vmatpush1.msra.mxu0 0.0
    %1315 = vmatprep.subr.mxu0 0.0
    %1316 = vmatpush1.msra.mxu0 0.0
    %1317 = vmatprep.subr.mxu0 0.0
    %1318 = vmatpush1.msra.mxu0 0.0
    %1319 = vmatprep.subr.mxu0 0.0
    %1320 = vmatpush1.msra.mxu0 0.0
    %1321 = vmatprep.subr.mxu0 0.0
    %1322 = vmatpush1.msra.mxu0 0.0
    %1323 = vmatprep.subr.mxu0 0.0
    %1324 = vmatpush1.msra.mxu0 0.0
    %1325 = vmatprep.subr.mxu0 0.0
    %1326 = vmatpush1.msra.mxu0 0.0
    %1327 = vmatprep.subr.mxu0 0.0
    %1328 = vmatpush1.msra.mxu0 0.0
    %1329 = vmatprep.subr.mxu0 0.0
    %1330 = vmatpush1.msra.mxu0 0.0
    %1331 = vmatprep.subr.mxu0 0.0
    %1332 = vmatpush1.msra.mxu0 0.0
    %1333 = vmatprep.subr.mxu0 0.0
    %1334 = vmatpush1.msra.mxu0 0.0
    %1335 = vmatprep.subr.mxu0 0.0
    %1336 = vmatpush1.msra.mxu0 0.0
    %1337 = vmatprep.subr.mxu0 0.0
    %1338 = vmatpush1.msra.mxu0 0.0
    %1339 = vmatprep.subr.mxu0 0.0
    %1340 = vmatpush1.msra.mxu0 0.0
    %1341 = vmatprep.subr.mxu0 0.0
    %1342 = vmatpush1.msra.mxu0 0.0
    %1343 = vmatprep.subr.mxu0 0.0
    %1344 = vmatpush1.msra.mxu0 0.0
    %1345 = vmatprep.subr.mxu0 0.0
    %1346 = vmatpush1.msra.mxu0 0.0
    %1347 = vmatprep.subr.mxu0 0.0
    %1348 = vmatpush1.msra.mxu0 0.0
    %1349 = vmatprep.subr.mxu0 0.0
    %1350 = vmatpush1.msra.mxu0 0.0
    %1351 = vmatprep.subr.mxu0 0.0
    %1352 = vmatpush1.msra.mxu0 0.0
    %1353 = vmatprep.subr.mxu0 0.0
    %1354 = vmatpush1.msra.mxu0 0.0
    %1355 = vmatprep.subr.mxu0 0.0
    %1356 = vmatpush1.msra.mxu0 0.0
    %1357 = vmatprep.subr.mxu0 0.0
    %1358 = vmatpush1.msra.mxu0 0.0
    %1359 = vmatprep.subr.mxu0 0.0
    %1360 = vmatpush1.msra.mxu0 0.0
    %1361 = vmatprep.subr.mxu0 0.0
    %1362 = vmatpush1.msra.mxu0 0.0
    %1363 = vmatprep.subr.mxu0 0.0
    %1364 = vmatpush1.msra.mxu0 0.0
    %1365 = vmatprep.subr.mxu0 0.0
    %1366 = vmatpush1.msra.mxu0 0.0
    %1367 = vmatprep.subr.mxu0 0.0
    %1368 = vmatpush1.msra.mxu0 0.0
    %1369 = vmatprep.subr.mxu0 0.0
    %1370 = vmatpush1.msra.mxu0 0.0
    %1371 = vmatprep.subr.mxu0 0.0
    %1372 = vmatpush1.msra.mxu0 0.0
    %1373 = vmatprep.mubr.f32.mxu0 0.0
    %v1374 = vand.u32 %v868, 4294901760
    %v1375 = vsub.f32 %v868, %v1374
    %1376 = vmatmul.mubr.f32.gmra.mrb[0].mxu0 %v1375
    %v1377 = vpop.f32.mrb[0].mxu0
    %v1378 = vadd.f32 %v1214, %v1377
    %v1379 = vpop.f32.mrb[0].mxu0
    %1380 = vmatprep.mubr.f32.mxu0 0.0
    %v1381 = vand.u32 %v871, 4294901760
    %v1382 = vsub.f32 %v871, %v1381
    %1383 = vmatmul.mubr.f32.gmra.mrb[0].mxu0 %v1382
    %v1384 = vpop.f32.mrb[0].mxu0
    %v1385 = vadd.f32 %v1220, %v1384
    %v1386 = vpop.f32.mrb[0].mxu0
    %1387 = vmatprep.mubr.f32.mxu0 0.0
    %v1388 = vand.u32 %v874, 4294901760
    %v1389 = vsub.f32 %v874, %v1388
    %1390 = vmatmul.mubr.f32.gmra.mrb[0].mxu0 %v1389
    %v1391 = vpop.f32.mrb[0].mxu0
    %v1392 = vadd.f32 %v1226, %v1391
    %v1393 = vpop.f32.mrb[0].mxu0
    %1394 = vmatprep.mubr.f32.mxu0 0.0
    %v1395 = vand.u32 %v877, 4294901760
    %v1396 = vsub.f32 %v877, %v1395
    %1397 = vmatmul.mubr.f32.gmra.mrb[0].mxu0 %v1396
    %v1398 = vpop.f32.mrb[0].mxu0
    %v1399 = vadd.f32 %v1232, %v1398
    %v1400 = vpop.f32.mrb[0].mxu0
    %1401 = vmatprep.mubr.f32.mxu0 0.0
    %v1402 = vand.u32 %v880, 4294901760
    %v1403 = vsub.f32 %v880, %v1402
    %1404 = vmatmul.mubr.f32.gmra.mrb[0].mxu0 %v1403
    %v1405 = vpop.f32.mrb[0].mxu0
    %v1406 = vadd.f32 %v1238, %v1405
    %v1407 = vpop.f32.mrb[0].mxu0
    %1408 = vmatprep.mubr.f32.mxu0 0.0
    %v1409 = vand.u32 %v883, 4294901760
    %v1410 = vsub.f32 %v883, %v1409
    %1411 = vmatmul.mubr.f32.gmra.mrb[0].mxu0 %v1410
    %v1412 = vpop.f32.mrb[0].mxu0
    %v1413 = vadd.f32 %v1244, %v1412
    %v1414 = vpop.f32.mrb[0].mxu0
    %1415 = vmatprep.mubr.f32.mxu0 0.0
    %v1416 = vand.u32 %v886, 4294901760
    %v1417 = vsub.f32 %v886, %v1416
    %1418 = vmatmul.mubr.f32.gmra.mrb[0].mxu0 %v1417
    %v1419 = vpop.f32.mrb[0].mxu0
    %v1420 = vadd.f32 %v1250, %v1419
    %v1421 = vpop.f32.mrb[0].mxu0
    %1422 = vmatprep.mubr.f32.mxu0 0.0
    %v1423 = vand.u32 %v889, 4294901760
    %v1424 = vsub.f32 %v889, %v1423
    %1425 = vmatmul.mubr.f32.gmra.mrb[0].mxu0 %v1424
    %v1426 = vpop.f32.mrb[0].mxu0
    %v1427 = vadd.f32 %v1256, %v1426
    %v1428 = vpop.f32.mrb[0].mxu0
    %1429 = vmatprep.mubr.f32.mxu0 0.0
    %v1430 = vand.u32 %v892, 4294901760
    %v1431 = vsub.f32 %v892, %v1430
    %1432 = vmatmul.mubr.f32.gmra.mrb[0].mxu0 %v1431
    %v1433 = vpop.f32.mrb[0].mxu0
    %v1434 = vadd.f32 %v1262, %v1433
    %v1435 = vpop.f32.mrb[0].mxu0
    %1436 = vmatprep.mubr.f32.mxu0 0.0
    %v1437 = vand.u32 %v895, 4294901760
    %v1438 = vsub.f32 %v895, %v1437
    %1439 = vmatmul.mubr.f32.gmra.mrb[0].mxu0 %v1438
    %v1440 = vpop.f32.mrb[0].mxu0
    %v1441 = vadd.f32 %v1268, %v1440
    %v1442 = vpop.f32.mrb[0].mxu0
    %1443 = vmatprep.mubr.f32.mxu0 0.0
    %v1444 = vand.u32 %v898, 4294901760
    %v1445 = vsub.f32 %v898, %v1444
    %1446 = vmatmul.mubr.f32.gmra.mrb[0].mxu0 %v1445
    %v1447 = vpop.f32.mrb[0].mxu0
    %v1448 = vadd.f32 %v1274, %v1447
    %v1449 = vpop.f32.mrb[0].mxu0
    %1450 = vmatprep.mubr.f32.mxu0 0.0
    %v1451 = vand.u32 %v901, 4294901760
    %v1452 = vsub.f32 %v901, %v1451
    %1453 = vmatmul.mubr.f32.gmra.mrb[0].mxu0 %v1452
    %v1454 = vpop.f32.mrb[0].mxu0
    %v1455 = vadd.f32 %v1280, %v1454
    %v1456 = vpop.f32.mrb[0].mxu0
    %1457 = vmatprep.mubr.f32.mxu0 0.0
    %v1458 = vand.u32 %v904, 4294901760
    %v1459 = vsub.f32 %v904, %v1458
    %1460 = vmatmul.mubr.f32.gmra.mrb[0].mxu0 %v1459
    %v1461 = vpop.f32.mrb[0].mxu0
    %v1462 = vadd.f32 %v1286, %v1461
    %v1463 = vpop.f32.mrb[0].mxu0
    %1464 = vmatprep.mubr.f32.mxu0 0.0
    %v1465 = vand.u32 %v907, 4294901760
    %v1466 = vsub.f32 %v907, %v1465
    %1467 = vmatmul.mubr.f32.gmra.mrb[0].mxu0 %v1466
    %v1468 = vpop.f32.mrb[0].mxu0
    %v1469 = vadd.f32 %v1292, %v1468
    %v1470 = vpop.f32.mrb[0].mxu0
    %1471 = vmatprep.mubr.f32.mxu0 0.0
    %v1472 = vand.u32 %v910, 4294901760
    %v1473 = vsub.f32 %v910, %v1472
    %1474 = vmatmul.mubr.f32.gmra.mrb[0].mxu0 %v1473
    %v1475 = vpop.f32.mrb[0].mxu0
    %v1476 = vadd.f32 %v1298, %v1475
    %v1477 = vpop.f32.mrb[0].mxu0
    %1478 = vmatprep.mubr.f32.mxu0 0.0
    %v1479 = vand.u32 %v913, 4294901760
    %v1480 = vsub.f32 %v913, %v1479
    %1481 = vmatmul.mubr.f32.gmra.mrb[0].mxu0 %v1480
    %v1482 = vpop.f32.mrb[0].mxu0
    %v1483 = vadd.f32 %v1304, %v1482
    %v1484 = vpop.f32.mrb[0].mxu0
    %1485 = vdwg.mxu0
    %1486 = vmatprep.subr.mxu0 0.0
    %v1487 = vand.u32 %v865, 4294901760
    %1488 = vmatpush1.msra.mxu0 %v1487
    %1489 = vmatprep.subr.mxu0 0.0
    %1490 = vmatpush1.msra.mxu0 0.0
    %1491 = vmatprep.subr.mxu0 0.0
    %1492 = vmatpush1.msra.mxu0 0.0
    %1493 = vmatprep.subr.mxu0 0.0
    %1494 = vmatpush1.msra.mxu0 0.0
    %1495 = vmatprep.subr.mxu0 0.0
    %1496 = vmatpush1.msra.mxu0 0.0
    %1497 = vmatprep.subr.mxu0 0.0
    %1498 = vmatpush1.msra.mxu0 0.0
    %1499 = vmatprep.subr.mxu0 0.0
    %1500 = vmatpush1.msra.mxu0 0.0
    %1501 = vmatprep.subr.mxu0 0.0
    %1502 = vmatpush1.msra.mxu0 0.0
    %1503 = vmatprep.subr.mxu0 0.0
    %1504 = vmatpush1.msra.mxu0 0.0
    %1505 = vmatprep.subr.mxu0 0.0
    %1506 = vmatpush1.msra.mxu0 0.0
    %1507 = vmatprep.subr.mxu0 0.0
    %1508 = vmatpush1.msra.mxu0 0.0
    %1509 = vmatprep.subr.mxu0 0.0
    %1510 = vmatpush1.msra.mxu0 0.0
    %1511 = vmatprep.subr.mxu0 0.0
    %1512 = vmatpush1.msra.mxu0 0.0
    %1513 = vmatprep.subr.mxu0 0.0
    %1514 = vmatpush1.msra.mxu0 0.0
    %1515 = vmatprep.subr.mxu0 0.0
    %1516 = vmatpush1.msra.mxu0 0.0
    %1517 = vmatprep.subr.mxu0 0.0
    %1518 = vmatpush1.msra.mxu0 0.0
    %1519 = vmatprep.subr.mxu0 0.0
    %1520 = vmatpush1.msra.mxu0 0.0
    %1521 = vmatprep.subr.mxu0 0.0
    %1522 = vmatpush1.msra.mxu0 0.0
    %1523 = vmatprep.subr.mxu0 0.0
    %1524 = vmatpush1.msra.mxu0 0.0
    %1525 = vmatprep.subr.mxu0 0.0
    %1526 = vmatpush1.msra.mxu0 0.0
    %1527 = vmatprep.subr.mxu0 0.0
    %1528 = vmatpush1.msra.mxu0 0.0
    %1529 = vmatprep.subr.mxu0 0.0
    %1530 = vmatpush1.msra.mxu0 0.0
    %1531 = vmatprep.subr.mxu0 0.0
    %1532 = vmatpush1.msra.mxu0 0.0
    %1533 = vmatprep.subr.mxu0 0.0
    %1534 = vmatpush1.msra.mxu0 0.0
    %1535 = vmatprep.subr.mxu0 0.0
    %1536 = vmatpush1.msra.mxu0 0.0
    %1537 = vmatprep.subr.mxu0 0.0
    %1538 = vmatpush1.msra.mxu0 0.0
    %1539 = vmatprep.subr.mxu0 0.0
    %1540 = vmatpush1.msra.mxu0 0.0
    %1541 = vmatprep.subr.mxu0 0.0
    %1542 = vmatpush1.msra.mxu0 0.0
    %1543 = vmatprep.subr.mxu0 0.0
    %1544 = vmatpush1.msra.mxu0 0.0
    %1545 = vmatprep.subr.mxu0 0.0
    %1546 = vmatpush1.msra.mxu0 0.0
    %1547 = vmatprep.subr.mxu0 0.0
    %1548 = vmatpush1.msra.mxu0 0.0
    %1549 = vmatprep.subr.mxu0 0.0
    %1550 = vmatpush1.msra.mxu0 0.0
    %1551 = vmatprep.mubr.f32.mxu0 0.0
    %v1552 = vand.u32 %v868, 4294901760
    %v1553 = vsub.f32 %v868, %v1552
    %v1554 = vand.u32 %v1553, 4294901760
    %1555 = vmatmul.mubr.f32.gmra.mrb[0].mxu0 %v1554
    %v1556 = vpop.f32.mrb[0].mxu0
    %v1557 = vadd.f32 %v1378, %v1556
    %v1558 = vpop.f32.mrb[0].mxu0
    %1559 = vmatprep.mubr.f32.mxu0 0.0
    %v1560 = vand.u32 %v871, 4294901760
    %v1561 = vsub.f32 %v871, %v1560
    %v1562 = vand.u32 %v1561, 4294901760
    %1563 = vmatmul.mubr.f32.gmra.mrb[0].mxu0 %v1562
    %v1564 = vpop.f32.mrb[0].mxu0
    %v1565 = vadd.f32 %v1385, %v1564
    %v1566 = vpop.f32.mrb[0].mxu0
    %1567 = vmatprep.mubr.f32.mxu0 0.0
    %v1568 = vand.u32 %v874, 4294901760
    %v1569 = vsub.f32 %v874, %v1568
    %v1570 = vand.u32 %v1569, 4294901760
    %1571 = vmatmul.mubr.f32.gmra.mrb[0].mxu0 %v1570
    %v1572 = vpop.f32.mrb[0].mxu0
    %v1573 = vadd.f32 %v1392, %v1572
    %v1574 = vpop.f32.mrb[0].mxu0
    %1575 = vmatprep.mubr.f32.mxu0 0.0
    %v1576 = vand.u32 %v877, 4294901760
    %v1577 = vsub.f32 %v877, %v1576
    %v1578 = vand.u32 %v1577, 4294901760
    %1579 = vmatmul.mubr.f32.gmra.mrb[0].mxu0 %v1578
    %v1580 = vpop.f32.mrb[0].mxu0
    %v1581 = vadd.f32 %v1399, %v1580
    %v1582 = vpop.f32.mrb[0].mxu0
    %1583 = vmatprep.mubr.f32.mxu0 0.0
    %v1584 = vand.u32 %v880, 4294901760
    %v1585 = vsub.f32 %v880, %v1584
    %v1586 = vand.u32 %v1585, 4294901760
    %1587 = vmatmul.mubr.f32.gmra.mrb[0].mxu0 %v1586
    %v1588 = vpop.f32.mrb[0].mxu0
    %v1589 = vadd.f32 %v1406, %v1588
    %v1590 = vpop.f32.mrb[0].mxu0
    %1591 = vmatprep.mubr.f32.mxu0 0.0
    %v1592 = vand.u32 %v883, 4294901760
    %v1593 = vsub.f32 %v883, %v1592
    %v1594 = vand.u32 %v1593, 4294901760
    %1595 = vmatmul.mubr.f32.gmra.mrb[0].mxu0 %v1594
    %v1596 = vpop.f32.mrb[0].mxu0
    %v1597 = vadd.f32 %v1413, %v1596
    %v1598 = vpop.f32.mrb[0].mxu0
    %1599 = vmatprep.mubr.f32.mxu0 0.0
    %v1600 = vand.u32 %v886, 4294901760
    %v1601 = vsub.f32 %v886, %v1600
    %v1602 = vand.u32 %v1601, 4294901760
    %1603 = vmatmul.mubr.f32.gmra.mrb[0].mxu0 %v1602
    %v1604 = vpop.f32.mrb[0].mxu0
    %v1605 = vadd.f32 %v1420, %v1604
    %v1606 = vpop.f32.mrb[0].mxu0
    %1607 = vmatprep.mubr.f32.mxu0 0.0
    %v1608 = vand.u32 %v889, 4294901760
    %v1609 = vsub.f32 %v889, %v1608
    %v1610 = vand.u32 %v1609, 4294901760
    %1611 = vmatmul.mubr.f32.gmra.mrb[0].mxu0 %v1610
    %v1612 = vpop.f32.mrb[0].mxu0
    %v1613 = vadd.f32 %v1427, %v1612
    %v1614 = vpop.f32.mrb[0].mxu0
    %1615 = vmatprep.mubr.f32.mxu0 0.0
    %v1616 = vand.u32 %v892, 4294901760
    %v1617 = vsub.f32 %v892, %v1616
    %v1618 = vand.u32 %v1617, 4294901760
    %1619 = vmatmul.mubr.f32.gmra.mrb[0].mxu0 %v1618
    %v1620 = vpop.f32.mrb[0].mxu0
    %v1621 = vadd.f32 %v1434, %v1620
    %v1622 = vpop.f32.mrb[0].mxu0
    %1623 = vmatprep.mubr.f32.mxu0 0.0
    %v1624 = vand.u32 %v895, 4294901760
    %v1625 = vsub.f32 %v895, %v1624
    %v1626 = vand.u32 %v1625, 4294901760
    %1627 = vmatmul.mubr.f32.gmra.mrb[0].mxu0 %v1626
    %v1628 = vpop.f32.mrb[0].mxu0
    %v1629 = vadd.f32 %v1441, %v1628
    %v1630 = vpop.f32.mrb[0].mxu0
    %1631 = vmatprep.mubr.f32.mxu0 0.0
    %v1632 = vand.u32 %v898, 4294901760
    %v1633 = vsub.f32 %v898, %v1632
    %v1634 = vand.u32 %v1633, 4294901760
    %1635 = vmatmul.mubr.f32.gmra.mrb[0].mxu0 %v1634
    %v1636 = vpop.f32.mrb[0].mxu0
    %v1637 = vadd.f32 %v1448, %v1636
    %v1638 = vpop.f32.mrb[0].mxu0
    %1639 = vmatprep.mubr.f32.mxu0 0.0
    %v1640 = vand.u32 %v901, 4294901760
    %v1641 = vsub.f32 %v901, %v1640
    %v1642 = vand.u32 %v1641, 4294901760
    %1643 = vmatmul.mubr.f32.gmra.mrb[0].mxu0 %v1642
    %v1644 = vpop.f32.mrb[0].mxu0
    %v1645 = vadd.f32 %v1455, %v1644
    %v1646 = vpop.f32.mrb[0].mxu0
    %1647 = vmatprep.mubr.f32.mxu0 0.0
    %v1648 = vand.u32 %v904, 4294901760
    %v1649 = vsub.f32 %v904, %v1648
    %v1650 = vand.u32 %v1649, 4294901760
    %1651 = vmatmul.mubr.f32.gmra.mrb[0].mxu0 %v1650
    %v1652 = vpop.f32.mrb[0].mxu0
    %v1653 = vadd.f32 %v1462, %v1652
    %v1654 = vpop.f32.mrb[0].mxu0
    %1655 = vmatprep.mubr.f32.mxu0 0.0
    %v1656 = vand.u32 %v907, 4294901760
    %v1657 = vsub.f32 %v907, %v1656
    %v1658 = vand.u32 %v1657, 4294901760
    %1659 = vmatmul.mubr.f32.gmra.mrb[0].mxu0 %v1658
    %v1660 = vpop.f32.mrb[0].mxu0
    %v1661 = vadd.f32 %v1469, %v1660
    %v1662 = vpop.f32.mrb[0].mxu0
    %1663 = vmatprep.mubr.f32.mxu0 0.0
    %v1664 = vand.u32 %v910, 4294901760
    %v1665 = vsub.f32 %v910, %v1664
    %v1666 = vand.u32 %v1665, 4294901760
    %1667 = vmatmul.mubr.f32.gmra.mrb[0].mxu0 %v1666
    %v1668 = vpop.f32.mrb[0].mxu0
    %v1669 = vadd.f32 %v1476, %v1668
    %v1670 = vpop.f32.mrb[0].mxu0
    %1671 = vmatprep.mubr.f32.mxu0 0.0
    %v1672 = vand.u32 %v913, 4294901760
    %v1673 = vsub.f32 %v913, %v1672
    %v1674 = vand.u32 %v1673, 4294901760
    %1675 = vmatmul.mubr.f32.gmra.mrb[0].mxu0 %v1674
    %v1676 = vpop.f32.mrb[0].mxu0
    %v1677 = vadd.f32 %v1483, %v1676
    %v1678 = vpop.f32.mrb[0].mxu0
    %1679 = vdwg.mxu0
    %1680 = vmatprep.subr.mxu0 0.0
    %v1681 = vand.u32 %v865, 4294901760
    %v1682 = vsub.f32 %v865, %v1681
    %v1683 = vand.u32 %v1682, 4294901760
    %1684 = vmatpush1.msra.mxu0 %v1683
    %1685 = vmatprep.subr.mxu0 0.0
    %1686 = vmatpush1.msra.mxu0 0.0
    %1687 = vmatprep.subr.mxu0 0.0
    %1688 = vmatpush1.msra.mxu0 0.0
    %1689 = vmatprep.subr.mxu0 0.0
    %1690 = vmatpush1.msra.mxu0 0.0
    %1691 = vmatprep.subr.mxu0 0.0
    %1692 = vmatpush1.msra.mxu0 0.0
    %1693 = vmatprep.subr.mxu0 0.0
    %1694 = vmatpush1.msra.mxu0 0.0
    %1695 = vmatprep.subr.mxu0 0.0
    %1696 = vmatpush1.msra.mxu0 0.0
    %1697 = vmatprep.subr.mxu0 0.0
    %1698 = vmatpush1.msra.mxu0 0.0
    %1699 = vmatprep.subr.mxu0 0.0
    %1700 = vmatpush1.msra.mxu0 0.0
    %1701 = vmatprep.subr.mxu0 0.0
    %1702 = vmatpush1.msra.mxu0 0.0
    %1703 = vmatprep.subr.mxu0 0.0
    %1704 = vmatpush1.msra.mxu0 0.0
    %1705 = vmatprep.subr.mxu0 0.0
    %1706 = vmatpush1.msra.mxu0 0.0
    %1707 = vmatprep.subr.mxu0 0.0
    %1708 = vmatpush1.msra.mxu0 0.0
    %1709 = vmatprep.subr.mxu0 0.0
    %1710 = vmatpush1.msra.mxu0 0.0
    %1711 = vmatprep.subr.mxu0 0.0
    %1712 = vmatpush1.msra.mxu0 0.0
    %1713 = vmatprep.subr.mxu0 0.0
    %1714 = vmatpush1.msra.mxu0 0.0
    %1715 = vmatprep.subr.mxu0 0.0
    %1716 = vmatpush1.msra.mxu0 0.0
    %1717 = vmatprep.subr.mxu0 0.0
    %1718 = vmatpush1.msra.mxu0 0.0
    %1719 = vmatprep.subr.mxu0 0.0
    %1720 = vmatpush1.msra.mxu0 0.0
    %1721 = vmatprep.subr.mxu0 0.0
    %1722 = vmatpush1.msra.mxu0 0.0
    %1723 = vmatprep.subr.mxu0 0.0
    %1724 = vmatpush1.msra.mxu0 0.0
    %1725 = vmatprep.subr.mxu0 0.0
    %1726 = vmatpush1.msra.mxu0 0.0
    %1727 = vmatprep.subr.mxu0 0.0
    %1728 = vmatpush1.msra.mxu0 0.0
    %1729 = vmatprep.subr.mxu0 0.0
    %1730 = vmatpush1.msra.mxu0 0.0
    %1731 = vmatprep.subr.mxu0 0.0
    %1732 = vmatpush1.msra.mxu0 0.0
    %1733 = vmatprep.subr.mxu0 0.0
    %1734 = vmatpush1.msra.mxu0 0.0
    %1735 = vmatprep.subr.mxu0 0.0
    %1736 = vmatpush1.msra.mxu0 0.0
    %1737 = vmatprep.subr.mxu0 0.0
    %1738 = vmatpush1.msra.mxu0 0.0
    %1739 = vmatprep.subr.mxu0 0.0
    %1740 = vmatpush1.msra.mxu0 0.0
    %1741 = vmatprep.subr.mxu0 0.0
    %1742 = vmatpush1.msra.mxu0 0.0
    %1743 = vmatprep.subr.mxu0 0.0
    %1744 = vmatpush1.msra.mxu0 0.0
    %1745 = vmatprep.subr.mxu0 0.0
    %1746 = vmatpush1.msra.mxu0 0.0
    %1747 = vmatprep.mubr.f32.mxu0 0.0
    %v1748 = vand.u32 %v868, 4294901760
    %1749 = vmatmul.mubr.f32.gmra.mrb[0].mxu0 %v1748
    %v1750 = vpop.f32.mrb[0].mxu0
    %v1751 = vadd.f32 %v1557, %v1750
    %v1752 = vpop.f32.mrb[0].mxu0
    %1753 = vmatprep.mubr.f32.mxu0 0.0
    %v1754 = vand.u32 %v871, 4294901760
    %1755 = vmatmul.mubr.f32.gmra.mrb[0].mxu0 %v1754
    %v1756 = vpop.f32.mrb[0].mxu0
    %v1757 = vadd.f32 %v1565, %v1756
    %v1758 = vpop.f32.mrb[0].mxu0
    %1759 = vmatprep.mubr.f32.mxu0 0.0
    %v1760 = vand.u32 %v874, 4294901760
    %1761 = vmatmul.mubr.f32.gmra.mrb[0].mxu0 %v1760
    %v1762 = vpop.f32.mrb[0].mxu0
    %v1763 = vadd.f32 %v1573, %v1762
    %v1764 = vpop.f32.mrb[0].mxu0
    %1765 = vmatprep.mubr.f32.mxu0 0.0
    %v1766 = vand.u32 %v877, 4294901760
    %1767 = vmatmul.mubr.f32.gmra.mrb[0].mxu0 %v1766
    %v1768 = vpop.f32.mrb[0].mxu0
    %v1769 = vadd.f32 %v1581, %v1768
    %v1770 = vpop.f32.mrb[0].mxu0
    %1771 = vmatprep.mubr.f32.mxu0 0.0
    %v1772 = vand.u32 %v880, 4294901760
    %1773 = vmatmul.mubr.f32.gmra.mrb[0].mxu0 %v1772
    %v1774 = vpop.f32.mrb[0].mxu0
    %v1775 = vadd.f32 %v1589, %v1774
    %v1776 = vpop.f32.mrb[0].mxu0
    %1777 = vmatprep.mubr.f32.mxu0 0.0
    %v1778 = vand.u32 %v883, 4294901760
    %1779 = vmatmul.mubr.f32.gmra.mrb[0].mxu0 %v1778
    %v1780 = vpop.f32.mrb[0].mxu0
    %v1781 = vadd.f32 %v1597, %v1780
    %v1782 = vpop.f32.mrb[0].mxu0
    %1783 = vmatprep.mubr.f32.mxu0 0.0
    %v1784 = vand.u32 %v886, 4294901760
    %1785 = vmatmul.mubr.f32.gmra.mrb[0].mxu0 %v1784
    %v1786 = vpop.f32.mrb[0].mxu0
    %v1787 = vadd.f32 %v1605, %v1786
    %v1788 = vpop.f32.mrb[0].mxu0
    %1789 = vmatprep.mubr.f32.mxu0 0.0
    %v1790 = vand.u32 %v889, 4294901760
    %1791 = vmatmul.mubr.f32.gmra.mrb[0].mxu0 %v1790
    %v1792 = vpop.f32.mrb[0].mxu0
    %v1793 = vadd.f32 %v1613, %v1792
    %v1794 = vpop.f32.mrb[0].mxu0
    %1795 = vmatprep.mubr.f32.mxu0 0.0
    %v1796 = vand.u32 %v892, 4294901760
    %1797 = vmatmul.mubr.f32.gmra.mrb[0].mxu0 %v1796
    %v1798 = vpop.f32.mrb[0].mxu0
    %v1799 = vadd.f32 %v1621, %v1798
    %v1800 = vpop.f32.mrb[0].mxu0
    %1801 = vmatprep.mubr.f32.mxu0 0.0
    %v1802 = vand.u32 %v895, 4294901760
    %1803 = vmatmul.mubr.f32.gmra.mrb[0].mxu0 %v1802
    %v1804 = vpop.f32.mrb[0].mxu0
    %v1805 = vadd.f32 %v1629, %v1804
    %v1806 = vpop.f32.mrb[0].mxu0
    %1807 = vmatprep.mubr.f32.mxu0 0.0
    %v1808 = vand.u32 %v898, 4294901760
    %1809 = vmatmul.mubr.f32.gmra.mrb[0].mxu0 %v1808
    %v1810 = vpop.f32.mrb[0].mxu0
    %v1811 = vadd.f32 %v1637, %v1810
    %v1812 = vpop.f32.mrb[0].mxu0
    %1813 = vmatprep.mubr.f32.mxu0 0.0
    %v1814 = vand.u32 %v901, 4294901760
    %1815 = vmatmul.mubr.f32.gmra.mrb[0].mxu0 %v1814
    %v1816 = vpop.f32.mrb[0].mxu0
    %v1817 = vadd.f32 %v1645, %v1816
    %v1818 = vpop.f32.mrb[0].mxu0
    %1819 = vmatprep.mubr.f32.mxu0 0.0
    %v1820 = vand.u32 %v904, 4294901760
    %1821 = vmatmul.mubr.f32.gmra.mrb[0].mxu0 %v1820
    %v1822 = vpop.f32.mrb[0].mxu0
    %v1823 = vadd.f32 %v1653, %v1822
    %v1824 = vpop.f32.mrb[0].mxu0
    %1825 = vmatprep.mubr.f32.mxu0 0.0
    %v1826 = vand.u32 %v907, 4294901760
    %1827 = vmatmul.mubr.f32.gmra.mrb[0].mxu0 %v1826
    %v1828 = vpop.f32.mrb[0].mxu0
    %v1829 = vadd.f32 %v1661, %v1828
    %v1830 = vpop.f32.mrb[0].mxu0
    %1831 = vmatprep.mubr.f32.mxu0 0.0
    %v1832 = vand.u32 %v910, 4294901760
    %1833 = vmatmul.mubr.f32.gmra.mrb[0].mxu0 %v1832
    %v1834 = vpop.f32.mrb[0].mxu0
    %v1835 = vadd.f32 %v1669, %v1834
    %v1836 = vpop.f32.mrb[0].mxu0
    %1837 = vmatprep.mubr.f32.mxu0 0.0
    %v1838 = vand.u32 %v913, 4294901760
    %1839 = vmatmul.mubr.f32.gmra.mrb[0].mxu0 %v1838
    %v1840 = vpop.f32.mrb[0].mxu0
    %v1841 = vadd.f32 %v1677, %v1840
    %v1842 = vpop.f32.mrb[0].mxu0
    %1843 = vdwg.mxu0
    %1844 = vmatprep.subr.mxu0 0.0
    %v1845 = vand.u32 %v865, 4294901760
    %1846 = vmatpush1.msra.mxu0 %v1845
    %1847 = vmatprep.subr.mxu0 0.0
    %1848 = vmatpush1.msra.mxu0 0.0
    %1849 = vmatprep.subr.mxu0 0.0
    %1850 = vmatpush1.msra.mxu0 0.0
    %1851 = vmatprep.subr.mxu0 0.0
    %1852 = vmatpush1.msra.mxu0 0.0
    %1853 = vmatprep.subr.mxu0 0.0
    %1854 = vmatpush1.msra.mxu0 0.0
    %1855 = vmatprep.subr.mxu0 0.0
    %1856 = vmatpush1.msra.mxu0 0.0
    %1857 = vmatprep.subr.mxu0 0.0
    %1858 = vmatpush1.msra.mxu0 0.0
    %1859 = vmatprep.subr.mxu0 0.0
    %1860 = vmatpush1.msra.mxu0 0.0
    %1861 = vmatprep.subr.mxu0 0.0
    %1862 = vmatpush1.msra.mxu0 0.0
    %1863 = vmatprep.subr.mxu0 0.0
    %1864 = vmatpush1.msra.mxu0 0.0
    %1865 = vmatprep.subr.mxu0 0.0
    %1866 = vmatpush1.msra.mxu0 0.0
    %1867 = vmatprep.subr.mxu0 0.0
    %1868 = vmatpush1.msra.mxu0 0.0
    %1869 = vmatprep.subr.mxu0 0.0
    %1870 = vmatpush1.msra.mxu0 0.0
    %1871 = vmatprep.subr.mxu0 0.0
    %1872 = vmatpush1.msra.mxu0 0.0
    %1873 = vmatprep.subr.mxu0 0.0
    %1874 = vmatpush1.msra.mxu0 0.0
    %1875 = vmatprep.subr.mxu0 0.0
    %1876 = vmatpush1.msra.mxu0 0.0
    %1877 = vmatprep.subr.mxu0 0.0
    %1878 = vmatpush1.msra.mxu0 0.0
    %1879 = vmatprep.subr.mxu0 0.0
    %1880 = vmatpush1.msra.mxu0 0.0
    %1881 = vmatprep.subr.mxu0 0.0
    %1882 = vmatpush1.msra.mxu0 0.0
    %1883 = vmatprep.subr.mxu0 0.0
    %1884 = vmatpush1.msra.mxu0 0.0
    %1885 = vmatprep.subr.mxu0 0.0
    %1886 = vmatpush1.msra.mxu0 0.0
    %1887 = vmatprep.subr.mxu0 0.0
    %1888 = vmatpush1.msra.mxu0 0.0
    %1889 = vmatprep.subr.mxu0 0.0
    %1890 = vmatpush1.msra.mxu0 0.0
    %1891 = vmatprep.subr.mxu0 0.0
    %1892 = vmatpush1.msra.mxu0 0.0
    %1893 = vmatprep.subr.mxu0 0.0
    %1894 = vmatpush1.msra.mxu0 0.0
    %1895 = vmatprep.subr.mxu0 0.0
    %1896 = vmatpush1.msra.mxu0 0.0
    %1897 = vmatprep.subr.mxu0 0.0
    %1898 = vmatpush1.msra.mxu0 0.0
    %1899 = vmatprep.subr.mxu0 0.0
    %1900 = vmatpush1.msra.mxu0 0.0
    %1901 = vmatprep.subr.mxu0 0.0
    %1902 = vmatpush1.msra.mxu0 0.0
    %1903 = vmatprep.subr.mxu0 0.0
    %1904 = vmatpush1.msra.mxu0 0.0
    %1905 = vmatprep.subr.mxu0 0.0
    %1906 = vmatpush1.msra.mxu0 0.0
    %1907 = vmatprep.subr.mxu0 0.0
    %1908 = vmatpush1.msra.mxu0 0.0
    %1909 = vmatprep.mubr.f32.mxu0 0.0
    %v1910 = vand.u32 %v868, 4294901760
    %1911 = vmatmul.mubr.f32.gmra.mrb[0].mxu0 %v1910
    %v1912 = vpop.f32.mrb[0].mxu0
    %v1913 = vadd.f32 %v1751, %v1912
    %v1914 = vpop.f32.mrb[0].mxu0
    %1915 = vmatprep.mubr.f32.mxu0 0.0
    %v1916 = vand.u32 %v871, 4294901760
    %1917 = vmatmul.mubr.f32.gmra.mrb[0].mxu0 %v1916
    %v1918 = vpop.f32.mrb[0].mxu0
    %v1919 = vadd.f32 %v1757, %v1918
    %v1920 = vpop.f32.mrb[0].mxu0
    %1921 = vmatprep.mubr.f32.mxu0 0.0
    %v1922 = vand.u32 %v874, 4294901760
    %1923 = vmatmul.mubr.f32.gmra.mrb[0].mxu0 %v1922
    %v1924 = vpop.f32.mrb[0].mxu0
    %v1925 = vadd.f32 %v1763, %v1924
    %v1926 = vpop.f32.mrb[0].mxu0
    %1927 = vmatprep.mubr.f32.mxu0 0.0
    %v1928 = vand.u32 %v877, 4294901760
    %1929 = vmatmul.mubr.f32.gmra.mrb[0].mxu0 %v1928
    %v1930 = vpop.f32.mrb[0].mxu0
    %v1931 = vadd.f32 %v1769, %v1930
    %v1932 = vpop.f32.mrb[0].mxu0
    %1933 = vmatprep.mubr.f32.mxu0 0.0
    %v1934 = vand.u32 %v880, 4294901760
    %1935 = vmatmul.mubr.f32.gmra.mrb[0].mxu0 %v1934
    %v1936 = vpop.f32.mrb[0].mxu0
    %v1937 = vadd.f32 %v1775, %v1936
    %v1938 = vpop.f32.mrb[0].mxu0
    %1939 = vmatprep.mubr.f32.mxu0 0.0
    %v1940 = vand.u32 %v883, 4294901760
    %1941 = vmatmul.mubr.f32.gmra.mrb[0].mxu0 %v1940
    %v1942 = vpop.f32.mrb[0].mxu0
    %v1943 = vadd.f32 %v1781, %v1942
    %v1944 = vpop.f32.mrb[0].mxu0
    %1945 = vmatprep.mubr.f32.mxu0 0.0
    %v1946 = vand.u32 %v886, 4294901760
    %1947 = vmatmul.mubr.f32.gmra.mrb[0].mxu0 %v1946
    %v1948 = vpop.f32.mrb[0].mxu0
    %v1949 = vadd.f32 %v1787, %v1948
    %v1950 = vpop.f32.mrb[0].mxu0
    %1951 = vmatprep.mubr.f32.mxu0 0.0
    %v1952 = vand.u32 %v889, 4294901760
    %1953 = vmatmul.mubr.f32.gmra.mrb[0].mxu0 %v1952
    %v1954 = vpop.f32.mrb[0].mxu0
    %v1955 = vadd.f32 %v1793, %v1954
    %v1956 = vpop.f32.mrb[0].mxu0
    %1957 = vmatprep.mubr.f32.mxu0 0.0
    %v1958 = vand.u32 %v892, 4294901760
    %1959 = vmatmul.mubr.f32.gmra.mrb[0].mxu0 %v1958
    %v1960 = vpop.f32.mrb[0].mxu0
    %v1961 = vadd.f32 %v1799, %v1960
    %v1962 = vpop.f32.mrb[0].mxu0
    %1963 = vmatprep.mubr.f32.mxu0 0.0
    %v1964 = vand.u32 %v895, 4294901760
    %1965 = vmatmul.mubr.f32.gmra.mrb[0].mxu0 %v1964
    %v1966 = vpop.f32.mrb[0].mxu0
    %v1967 = vadd.f32 %v1805, %v1966
    %v1968 = vpop.f32.mrb[0].mxu0
    %1969 = vmatprep.mubr.f32.mxu0 0.0
    %v1970 = vand.u32 %v898, 4294901760
    %1971 = vmatmul.mubr.f32.gmra.mrb[0].mxu0 %v1970
    %v1972 = vpop.f32.mrb[0].mxu0
    %v1973 = vadd.f32 %v1811, %v1972
    %v1974 = vpop.f32.mrb[0].mxu0
    %1975 = vmatprep.mubr.f32.mxu0 0.0
    %v1976 = vand.u32 %v901, 4294901760
    %1977 = vmatmul.mubr.f32.gmra.mrb[0].mxu0 %v1976
    %v1978 = vpop.f32.mrb[0].mxu0
    %v1979 = vadd.f32 %v1817, %v1978
    %v1980 = vpop.f32.mrb[0].mxu0
    %1981 = vmatprep.mubr.f32.mxu0 0.0
    %v1982 = vand.u32 %v904, 4294901760
    %1983 = vmatmul.mubr.f32.gmra.mrb[0].mxu0 %v1982
    %v1984 = vpop.f32.mrb[0].mxu0
    %v1985 = vadd.f32 %v1823, %v1984
    %v1986 = vpop.f32.mrb[0].mxu0
    %1987 = vmatprep.mubr.f32.mxu0 0.0
    %v1988 = vand.u32 %v907, 4294901760
    %1989 = vmatmul.mubr.f32.gmra.mrb[0].mxu0 %v1988
    %v1990 = vpop.f32.mrb[0].mxu0
    %v1991 = vadd.f32 %v1829, %v1990
    %v1992 = vpop.f32.mrb[0].mxu0
    %1993 = vmatprep.mubr.f32.mxu0 0.0
    %v1994 = vand.u32 %v910, 4294901760
    %1995 = vmatmul.mubr.f32.gmra.mrb[0].mxu0 %v1994
    %v1996 = vpop.f32.mrb[0].mxu0
    %v1997 = vadd.f32 %v1835, %v1996
    %v1998 = vpop.f32.mrb[0].mxu0
    %1999 = vmatprep.mubr.f32.mxu0 0.0
    %v2000 = vand.u32 %v913, 4294901760
    %2001 = vmatmul.mubr.f32.gmra.mrb[0].mxu0 %v2000
    %v2002 = vpop.f32.mrb[0].mxu0
    %v2003 = vadd.f32 %v1841, %v2002
    %v2004 = vpop.f32.mrb[0].mxu0
    %2005 = vdwg.mxu0
    %v2006 = vadd.f32 %v48, %v1913
    %v2007 = vadd.f32 %v49, %v1919
    %v2008 = vadd.f32 %v50, %v1925
    %v2009 = vadd.f32 %v51, %v1931
    %v2010 = vadd.f32 %v52, %v1937
    %v2011 = vadd.f32 %v53, %v1943
    %v2012 = vadd.f32 %v54, %v1949
    %v2013 = vadd.f32 %v55, %v1955
    %v2014 = vadd.f32 %v56, %v1961
    %v2015 = vadd.f32 %v57, %v1967
    %v2016 = vadd.f32 %v58, %v1973
    %v2017 = vadd.f32 %v59, %v1979
    %v2018 = vadd.f32 %v60, %v1985
    %v2019 = vadd.f32 %v61, %v1991
    %v2020 = vadd.f32 %v62, %v1997
    %v2021 = vadd.f32 %v63, %v2003
    %2022 = vst.msk [vmem:[%s5] sm:$0xff] %vm65, %v2006
    %2023 = vst.msk [vmem:[%s5 + $0x8] sm:$0xff] %vm65, %v2007
    %2024 = vst.msk [vmem:[%s5 + $0x10] sm:$0xff] %vm65, %v2008
    %2025 = vst.msk [vmem:[%s5 + $0x18] sm:$0xff] %vm65, %v2009
    %2026 = vst.msk [vmem:[%s5 + $0x20] sm:$0xff] %vm65, %v2010
    %2027 = vst.msk [vmem:[%s5 + $0x28] sm:$0xff] %vm65, %v2011
    %2028 = vst.msk [vmem:[%s5 + $0x30] sm:$0xff] %vm65, %v2012
    %2029 = vst.msk [vmem:[%s5 + $0x38] sm:$0xff] %vm65, %v2013
    %2030 = vst.msk [vmem:[%s5 + $0x40] sm:$0xff] %vm65, %v2014
    %2031 = vst.msk [vmem:[%s5 + $0x48] sm:$0xff] %vm65, %v2015
    %2032 = vst.msk [vmem:[%s5 + $0x50] sm:$0xff] %vm65, %v2016
    %2033 = vst.msk [vmem:[%s5 + $0x58] sm:$0xff] %vm65, %v2017
    %2034 = vst.msk [vmem:[%s5 + $0x60] sm:$0xff] %vm65, %v2018
    %2035 = vst.msk [vmem:[%s5 + $0x68] sm:$0xff] %vm65, %v2019
    %2036 = vst.msk [vmem:[%s5 + $0x70] sm:$0xff] %vm65, %v2020
    %2037 = vst.msk [vmem:[%s5 + $0x78] sm:$0xff] %vm65, %v2021
    %2038 = vst [vmem:[#allocation7] sm:$0x1] %v826
    // Predicated region
    $region30: #{composite_forward.1} parent=1 // pred_check
      _
    $region31: #{composite_forward.1} parent=1 // pred_check_branch
      %2040 = sbr.rel (0) target = $region33
    $region32: #{composite_forward.1} parent=1 // pred_region
      _
    $region33: #{composite_forward.1} parent=1 // pred_fallthru
      _
    // Predicated region
    $region34: #{composite_forward.1} parent=1 // pred_check
      _
    $region35: #{composite_forward.1} parent=1 // pred_check_branch
      %2042 = sbr.rel (0) target = $region37
    $region36: #{composite_forward.1} parent=1 // pred_region
      %s2044 = ssub.s32 16, 16
      %2045 = vsyncadd [#allocation3], %s2044
      %s2047 = sshll.u32 [#allocation7], 4
      %s2048 = int_to_ptr.vmem [resolvable:$true] %s2047
      %2050 = dma.vmem_to_hbm [thread:$0]  %s2048, 16, %s6, [#allocation3]
    $region37: #{composite_forward.1} parent=1 // pred_fallthru
      _
    // Predicated region
    $region38: #{composite_forward.1} parent=1 // pred_check
      _
    $region39: #{composite_forward.1} parent=1 // pred_check_branch
      %2052 = sbr.rel (0) target = $region41
    $region40: #{composite_forward.1} parent=1 // pred_region
      _
    $region41: #{composite_forward.1} parent=1 // pred_fallthru
      _
    // Predicated region
    $region42: #{composite_forward.1} parent=1 // pred_check
      _
    $region43: #{composite_forward.1} parent=1 // pred_check_branch
      %2054 = sbr.rel (0) target = $region45
    $region44: #{composite_forward.1} parent=1 // pred_region
      %2055 = dma.done [#allocation3], 16
    $region45: #{composite_forward.1} parent=1 // pred_fallthru
      _
    %2056 = vsyncpa [#allocation3], 1
    %2057 = vsyncpa [#allocation4], 1
    %2058 = vsyncpa [#allocation6], 1

</llo_original>
